<compile_context>
chip_gen: v7x
topology: tpu7x:2x2x1
jax: 0.10.0
libtpu: 0.0.40
codegen_flags: <defaults>
</compile_context>

<pallas_src>
import functools

import jax
import jax.numpy as jnp
from jax.experimental import pallas as pl
from jax.experimental.pallas import tpu as pltpu

OUT_PAD = 128  # lane-dense padded width of the final Linear output


def _make_rnn_kernel(num_layers: int, seq_len: int, batch: int, hidden: int):
    """Builds the Pallas kernel body for static depth / seq / batch / hidden."""

    def kernel(*refs):
        # refs layout:
        #   x_ref                               (S*B, F)  time-major flattened
        #   per layer l: wih_t (in,H), whh_t (H,H), b (1,H)   [b = b_ih + b_hh]
        #   wout_pad (H, OUT_PAD), bout_pad (1, OUT_PAD)
        #   o_ref                               (B, OUT_PAD)
        #   seq_ref (scratch)                   (S*B, H)  inter-layer sequence
        x_ref = refs[0]
        layer_refs = refs[1:1 + 3 * num_layers]
        wout_ref = refs[1 + 3 * num_layers]
        bout_ref = refs[2 + 3 * num_layers]
        o_ref = refs[3 + 3 * num_layers]
        seq_ref = refs[4 + 3 * num_layers]

        S, B, H = seq_len, batch, hidden

        h_last = None
        for l in range(num_layers):
            # Load this layer's weights/biases ONCE (hoisted out of the
            # time recurrence; they stay resident in vregs).
            wih_t = layer_refs[3 * l + 0][...]   # (in, H)
            whh_t = layer_refs[3 * l + 1][...]   # (H, H)
            bias = layer_refs[3 * l + 2][...]    # (1, H) merged b_ih + b_hh

            # Layer input: x for layer 0, previous layer's full output
            # sequence for deeper layers.  Single bulk VMEM load.
            seq_in = x_ref[...] if l == 0 else seq_ref[...]     # (S*B, in)

            # Batched input projection for ALL timesteps + merged bias,
            # computed off the sequential critical path with one MXU push.
            proj = (jnp.dot(seq_in, wih_t,
                            preferred_element_type=jnp.float32) + bias)  # (S*B, H)

            # Sequential recurrence: only h @ W_hh^T remains per timestep.
            # h is carried as a value (vregs) — no VMEM round-trip.
            h = jnp.zeros((B, H), jnp.float32)
            for t in range(S):  # static trip count -> fully unrolled
                p_t = proj[t * B:(t + 1) * B, :]                # (B, H) static slice
                h = jnp.tanh(
                    p_t + jnp.dot(h, whh_t, preferred_element_type=jnp.float32))
                if l + 1 < num_layers:
                    # Store the output sequence for the next layer (static
                    # slice store; off the h->h dependency chain).
                    seq_ref[t * B:(t + 1) * B, :] = h
            h_last = h

        # out = Linear(out_x[-1]); lane-dense padded to OUT_PAD columns.
        o_ref[...] = (
            jnp.dot(h_last, wout_ref[...], preferred_element_type=jnp.float32)
            + bout_ref[...]
        )

    return kernel


@functools.partial(jax.jit, static_argnames=("num_layers", "hidden_size"))
def my_rnn_forward(x, kernel_params, *, num_layers, hidden_size):
    """x: (batch, seq, feature) float32. Returns (batch, 2) float32."""
    B, S, F = x.shape
    # torch: x = x.view(x.size(1), x.size(0), -1)  (row-major reinterpret).
    # Flattening that (S, B, F) view to (S*B, F) is the same reinterpret of
    # the same contiguous buffer, so reshape directly.
    x_flat = jnp.reshape(x, (S * B, F))

    kernel = _make_rnn_kernel(num_layers, S, B, hidden_size)
    vmem_spec = pl.BlockSpec(memory_space=pltpu.MemorySpace.VMEM)
    n_in = 1 + len(kernel_params)

    out_pad = pl.pallas_call(
        kernel,
        out_shape=jax.ShapeDtypeStruct((B, OUT_PAD), jnp.float32),
        in_specs=[vmem_spec] * n_in,
        out_specs=vmem_spec,
        scratch_shapes=[pltpu.VMEM((S * B, hidden_size), jnp.float32)],
    )(x_flat, *kernel_params)
    return out_pad[:, :2]


def init_params(key, feature_size, hidden_size, num_layers):
    """Torch-style parameter shapes (nn.RNN + nn.Linear), deterministic."""
    bound = 1.0 / jnp.sqrt(hidden_size)
    layers = []
    for l in range(num_layers):
        in_dim = feature_size if l == 0 else hidden_size
        key, k1, k2, k3, k4 = jax.random.split(key, 5)
        w_ih = jax.random.uniform(k1, (hidden_size, in_dim), jnp.float32,
                                  -bound, bound)
        w_hh = jax.random.uniform(k2, (hidden_size, hidden_size), jnp.float32,
                                  -bound, bound)
        b_ih = jax.random.uniform(k3, (hidden_size,), jnp.float32, -bound, bound)
        b_hh = jax.random.uniform(k4, (hidden_size,), jnp.float32, -bound, bound)
        layers.append((w_ih, w_hh, b_ih, b_hh))
    key, k5, k6 = jax.random.split(key, 3)
    w_out = jax.random.uniform(k5, (2, hidden_size), jnp.float32, -bound, bound)
    b_out = jax.random.uniform(k6, (2,), jnp.float32, -bound, bound)
    return layers, (w_out, b_out)


def prepare_kernel_params(layers, out_params):
    """Pre-transpose weights, merge the two RNN biases, pad the head lane-dense."""
    flat = []
    for (w_ih, w_hh, b_ih, b_hh) in layers:
        flat += [w_ih.T, w_hh.T, (b_ih + b_hh)[None, :]]
    w_out, b_out = out_params
    H = w_out.shape[1]
    w_out_pad = jnp.zeros((H, OUT_PAD), jnp.float32).at[:, :2].set(w_out.T)
    b_out_pad = jnp.zeros((1, OUT_PAD), jnp.float32).at[:, :2].set(b_out[None, :])
    flat += [w_out_pad, b_out_pad]
    return flat


def reference_forward(x, layers, out_params, num_layers, hidden_size):
    """Pure-JAX reference mirroring the PyTorch forward (eval mode)."""
    B, S, F = x.shape
    x_sbf = jnp.reshape(x, (S, B, F))
    h = [jnp.zeros((B, hidden_size), jnp.float32) for _ in range(num_layers)]
    top = None
    for t in range(S):
        inp = x_sbf[t]
        for l, (w_ih, w_hh, b_ih, b_hh) in enumerate(layers):
            h_new = jnp.tanh(inp @ w_ih.T + b_ih + h[l] @ w_hh.T + b_hh)
            h[l] = h_new
            inp = h_new
        top = inp
    w_out, b_out = out_params
    return top @ w_out.T + b_out


if __name__ == "__main__":
    feature_size = 32
    hidden_size = 32
    num_layers = 2
    batch = 8
    seq = 8

    key = jax.random.PRNGKey(0)
    kx, kp = jax.random.split(key)
    x = jax.random.normal(kx, (batch, seq, feature_size), jnp.float32)
    layers, out_params = init_params(kp, feature_size, hidden_size, num_layers)
    kernel_params = prepare_kernel_params(layers, out_params)

    out = my_rnn_forward(x, kernel_params, num_layers=num_layers,
                         hidden_size=hidden_size)
    out = jax.block_until_ready(out)

    ref = reference_forward(x, layers, out_params, num_layers, hidden_size)
    assert out.shape == (batch, 2), out.shape
    assert jnp.allclose(out, ref, atol=2e-5, rtol=2e-5), (out, ref)

    print("KERNEL_OK")
</pallas_src>

<mosaic_0001>
module attributes {stable_mosaic.version = 11 : i64} {
  func.func @kernel(%arg0: memref<64x32xf32, #tpu.memory_space<vmem>>, %arg1: memref<32x32xf32, #tpu.memory_space<vmem>>, %arg2: memref<32x32xf32, #tpu.memory_space<vmem>>, %arg3: memref<1x32xf32, #tpu.memory_space<vmem>>, %arg4: memref<32x32xf32, #tpu.memory_space<vmem>>, %arg5: memref<32x32xf32, #tpu.memory_space<vmem>>, %arg6: memref<1x32xf32, #tpu.memory_space<vmem>>, %arg7: memref<32x128xf32, #tpu.memory_space<vmem>>, %arg8: memref<1x128xf32, #tpu.memory_space<vmem>>, %arg9: memref<8x128xf32, #tpu.memory_space<vmem>>, %arg10: memref<64x32xf32, #tpu.memory_space<vmem>>) attributes {dimension_semantics = [], scalar_prefetch = 0 : i64, scratch_operands = 1 : i64, tpu.core_type = #tpu.core_type<tc>} {
    %c0 = arith.constant 0 : index
    %c0_0 = arith.constant 0 : index
    %0 = vector.load %arg1[%c0, %c0_0] : memref<32x32xf32, #tpu.memory_space<vmem>>, vector<32x32xf32>
    %c0_1 = arith.constant 0 : index
    %c0_2 = arith.constant 0 : index
    %1 = vector.load %arg2[%c0_1, %c0_2] : memref<32x32xf32, #tpu.memory_space<vmem>>, vector<32x32xf32>
    %c0_3 = arith.constant 0 : index
    %c0_4 = arith.constant 0 : index
    %2 = vector.load %arg3[%c0_3, %c0_4] : memref<1x32xf32, #tpu.memory_space<vmem>>, vector<1x32xf32>
    %c0_5 = arith.constant 0 : index
    %c0_6 = arith.constant 0 : index
    %3 = vector.load %arg0[%c0_5, %c0_6] : memref<64x32xf32, #tpu.memory_space<vmem>>, vector<64x32xf32>
    %cst = arith.constant dense<0.000000e+00> : vector<64x32xf32>
    %4 = tpu.matmul %3, %0, %cst {dimension_numbers = #tpu.dot_dimension_numbers<[1], [0], [0], [1], [0, 0, 1, 1], [], []>} : vector<64x32xf32>, vector<32x32xf32>, vector<64x32xf32> -> vector<64x32xf32>
    %5 = vector.broadcast %2 : vector<1x32xf32> to vector<64x32xf32>
    %6 = arith.addf %4, %5 : vector<64x32xf32>
    %cst_7 = arith.constant 0.000000e+00 : f32
    %7 = vector.broadcast %cst_7 : f32 to vector<8x32xf32>
    %8 = vector.extract_strided_slice %6 {offsets = [0, 0], sizes = [8, 32], strides = [1, 1]} : vector<64x32xf32> to vector<8x32xf32>
    %cst_8 = arith.constant dense<0.000000e+00> : vector<8x32xf32>
    %9 = tpu.matmul %7, %1, %cst_8 {dimension_numbers = #tpu.dot_dimension_numbers<[1], [0], [0], [1], [0, 0, 1, 1], [], []>} : vector<8x32xf32>, vector<32x32xf32>, vector<8x32xf32> -> vector<8x32xf32>
    %10 = arith.addf %8, %9 : vector<8x32xf32>
    %11 = math.tanh %10 : vector<8x32xf32>
    %c0_9 = arith.constant 0 : index
    %c0_10 = arith.constant 0 : index
    %12 = vector.load %arg10[%c0_9, %c0_10] : memref<64x32xf32, #tpu.memory_space<vmem>>, vector<8x32xf32>
    tpu.vector_store %arg10[%c0_9, %c0_10], %11 {strides = array<i32>} : memref<64x32xf32, #tpu.memory_space<vmem>>, vector<8x32xf32>,
    %13 = vector.extract_strided_slice %6 {offsets = [8, 0], sizes = [8, 32], strides = [1, 1]} : vector<64x32xf32> to vector<8x32xf32>
    %cst_11 = arith.constant dense<0.000000e+00> : vector<8x32xf32>
    %14 = tpu.matmul %11, %1, %cst_11 {dimension_numbers = #tpu.dot_dimension_numbers<[1], [0], [0], [1], [0, 0, 1, 1], [], []>} : vector<8x32xf32>, vector<32x32xf32>, vector<8x32xf32> -> vector<8x32xf32>
    %15 = arith.addf %13, %14 : vector<8x32xf32>
    %16 = math.tanh %15 : vector<8x32xf32>
    %c8 = arith.constant 8 : index
    %c0_12 = arith.constant 0 : index
    %17 = vector.load %arg10[%c8, %c0_12] : memref<64x32xf32, #tpu.memory_space<vmem>>, vector<8x32xf32>
    tpu.vector_store %arg10[%c8, %c0_12], %16 {strides = array<i32>} : memref<64x32xf32, #tpu.memory_space<vmem>>, vector<8x32xf32>,
    %18 = vector.extract_strided_slice %6 {offsets = [16, 0], sizes = [8, 32], strides = [1, 1]} : vector<64x32xf32> to vector<8x32xf32>
    %cst_13 = arith.constant dense<0.000000e+00> : vector<8x32xf32>
    %19 = tpu.matmul %16, %1, %cst_13 {dimension_numbers = #tpu.dot_dimension_numbers<[1], [0], [0], [1], [0, 0, 1, 1], [], []>} : vector<8x32xf32>, vector<32x32xf32>, vector<8x32xf32> -> vector<8x32xf32>
    %20 = arith.addf %18, %19 : vector<8x32xf32>
    %21 = math.tanh %20 : vector<8x32xf32>
    %c16 = arith.constant 16 : index
    %c0_14 = arith.constant 0 : index
    %22 = vector.load %arg10[%c16, %c0_14] : memref<64x32xf32, #tpu.memory_space<vmem>>, vector<8x32xf32>
    tpu.vector_store %arg10[%c16, %c0_14], %21 {strides = array<i32>} : memref<64x32xf32, #tpu.memory_space<vmem>>, vector<8x32xf32>,
    %23 = vector.extract_strided_slice %6 {offsets = [24, 0], sizes = [8, 32], strides = [1, 1]} : vector<64x32xf32> to vector<8x32xf32>
    %cst_15 = arith.constant dense<0.000000e+00> : vector<8x32xf32>
    %24 = tpu.matmul %21, %1, %cst_15 {dimension_numbers = #tpu.dot_dimension_numbers<[1], [0], [0], [1], [0, 0, 1, 1], [], []>} : vector<8x32xf32>, vector<32x32xf32>, vector<8x32xf32> -> vector<8x32xf32>
    %25 = arith.addf %23, %24 : vector<8x32xf32>
    %26 = math.tanh %25 : vector<8x32xf32>
    %c24 = arith.constant 24 : index
    %c0_16 = arith.constant 0 : index
    %27 = vector.load %arg10[%c24, %c0_16] : memref<64x32xf32, #tpu.memory_space<vmem>>, vector<8x32xf32>
    tpu.vector_store %arg10[%c24, %c0_16], %26 {strides = array<i32>} : memref<64x32xf32, #tpu.memory_space<vmem>>, vector<8x32xf32>,
    %28 = vector.extract_strided_slice %6 {offsets = [32, 0], sizes = [8, 32], strides = [1, 1]} : vector<64x32xf32> to vector<8x32xf32>
    %cst_17 = arith.constant dense<0.000000e+00> : vector<8x32xf32>
    %29 = tpu.matmul %26, %1, %cst_17 {dimension_numbers = #tpu.dot_dimension_numbers<[1], [0], [0], [1], [0, 0, 1, 1], [], []>} : vector<8x32xf32>, vector<32x32xf32>, vector<8x32xf32> -> vector<8x32xf32>
    %30 = arith.addf %28, %29 : vector<8x32xf32>
    %31 = math.tanh %30 : vector<8x32xf32>
    %c32 = arith.constant 32 : index
    %c0_18 = arith.constant 0 : index
    %32 = vector.load %arg10[%c32, %c0_18] : memref<64x32xf32, #tpu.memory_space<vmem>>, vector<8x32xf32>
    tpu.vector_store %arg10[%c32, %c0_18], %31 {strides = array<i32>} : memref<64x32xf32, #tpu.memory_space<vmem>>, vector<8x32xf32>,
    %33 = vector.extract_strided_slice %6 {offsets = [40, 0], sizes = [8, 32], strides = [1, 1]} : vector<64x32xf32> to vector<8x32xf32>
    %cst_19 = arith.constant dense<0.000000e+00> : vector<8x32xf32>
    %34 = tpu.matmul %31, %1, %cst_19 {dimension_numbers = #tpu.dot_dimension_numbers<[1], [0], [0], [1], [0, 0, 1, 1], [], []>} : vector<8x32xf32>, vector<32x32xf32>, vector<8x32xf32> -> vector<8x32xf32>
    %35 = arith.addf %33, %34 : vector<8x32xf32>
    %36 = math.tanh %35 : vector<8x32xf32>
    %c40 = arith.constant 40 : index
    %c0_20 = arith.constant 0 : index
    %37 = vector.load %arg10[%c40, %c0_20] : memref<64x32xf32, #tpu.memory_space<vmem>>, vector<8x32xf32>
    tpu.vector_store %arg10[%c40, %c0_20], %36 {strides = array<i32>} : memref<64x32xf32, #tpu.memory_space<vmem>>, vector<8x32xf32>,
    %38 = vector.extract_strided_slice %6 {offsets = [48, 0], sizes = [8, 32], strides = [1, 1]} : vector<64x32xf32> to vector<8x32xf32>
    %cst_21 = arith.constant dense<0.000000e+00> : vector<8x32xf32>
    %39 = tpu.matmul %36, %1, %cst_21 {dimension_numbers = #tpu.dot_dimension_numbers<[1], [0], [0], [1], [0, 0, 1, 1], [], []>} : vector<8x32xf32>, vector<32x32xf32>, vector<8x32xf32> -> vector<8x32xf32>
    %40 = arith.addf %38, %39 : vector<8x32xf32>
    %41 = math.tanh %40 : vector<8x32xf32>
    %c48 = arith.constant 48 : index
    %c0_22 = arith.constant 0 : index
    %42 = vector.load %arg10[%c48, %c0_22] : memref<64x32xf32, #tpu.memory_space<vmem>>, vector<8x32xf32>
    tpu.vector_store %arg10[%c48, %c0_22], %41 {strides = array<i32>} : memref<64x32xf32, #tpu.memory_space<vmem>>, vector<8x32xf32>,
    %43 = vector.extract_strided_slice %6 {offsets = [56, 0], sizes = [8, 32], strides = [1, 1]} : vector<64x32xf32> to vector<8x32xf32>
    %cst_23 = arith.constant dense<0.000000e+00> : vector<8x32xf32>
    %44 = tpu.matmul %41, %1, %cst_23 {dimension_numbers = #tpu.dot_dimension_numbers<[1], [0], [0], [1], [0, 0, 1, 1], [], []>} : vector<8x32xf32>, vector<32x32xf32>, vector<8x32xf32> -> vector<8x32xf32>
    %45 = arith.addf %43, %44 : vector<8x32xf32>
    %46 = math.tanh %45 : vector<8x32xf32>
    %c56 = arith.constant 56 : index
    %c0_24 = arith.constant 0 : index
    %47 = vector.load %arg10[%c56, %c0_24] : memref<64x32xf32, #tpu.memory_space<vmem>>, vector<8x32xf32>
    tpu.vector_store %arg10[%c56, %c0_24], %46 {strides = array<i32>} : memref<64x32xf32, #tpu.memory_space<vmem>>, vector<8x32xf32>,
    %c0_25 = arith.constant 0 : index
    %c0_26 = arith.constant 0 : index
    %48 = vector.load %arg4[%c0_25, %c0_26] : memref<32x32xf32, #tpu.memory_space<vmem>>, vector<32x32xf32>
    %c0_27 = arith.constant 0 : index
    %c0_28 = arith.constant 0 : index
    %49 = vector.load %arg5[%c0_27, %c0_28] : memref<32x32xf32, #tpu.memory_space<vmem>>, vector<32x32xf32>
    %c0_29 = arith.constant 0 : index
    %c0_30 = arith.constant 0 : index
    %50 = vector.load %arg6[%c0_29, %c0_30] : memref<1x32xf32, #tpu.memory_space<vmem>>, vector<1x32xf32>
    %c0_31 = arith.constant 0 : index
    %c0_32 = arith.constant 0 : index
    %51 = vector.load %arg10[%c0_31, %c0_32] : memref<64x32xf32, #tpu.memory_space<vmem>>, vector<64x32xf32>
    %cst_33 = arith.constant dense<0.000000e+00> : vector<64x32xf32>
    %52 = tpu.matmul %51, %48, %cst_33 {dimension_numbers = #tpu.dot_dimension_numbers<[1], [0], [0], [1], [0, 0, 1, 1], [], []>} : vector<64x32xf32>, vector<32x32xf32>, vector<64x32xf32> -> vector<64x32xf32>
    %53 = vector.broadcast %50 : vector<1x32xf32> to vector<64x32xf32>
    %54 = arith.addf %52, %53 : vector<64x32xf32>
    %cst_34 = arith.constant 0.000000e+00 : f32
    %55 = vector.broadcast %cst_34 : f32 to vector<8x32xf32>
    %56 = vector.extract_strided_slice %54 {offsets = [0, 0], sizes = [8, 32], strides = [1, 1]} : vector<64x32xf32> to vector<8x32xf32>
    %cst_35 = arith.constant dense<0.000000e+00> : vector<8x32xf32>
    %57 = tpu.matmul %55, %49, %cst_35 {dimension_numbers = #tpu.dot_dimension_numbers<[1], [0], [0], [1], [0, 0, 1, 1], [], []>} : vector<8x32xf32>, vector<32x32xf32>, vector<8x32xf32> -> vector<8x32xf32>
    %58 = arith.addf %56, %57 : vector<8x32xf32>
    %59 = math.tanh %58 : vector<8x32xf32>
    %60 = vector.extract_strided_slice %54 {offsets = [8, 0], sizes = [8, 32], strides = [1, 1]} : vector<64x32xf32> to vector<8x32xf32>
    %cst_36 = arith.constant dense<0.000000e+00> : vector<8x32xf32>
    %61 = tpu.matmul %59, %49, %cst_36 {dimension_numbers = #tpu.dot_dimension_numbers<[1], [0], [0], [1], [0, 0, 1, 1], [], []>} : vector<8x32xf32>, vector<32x32xf32>, vector<8x32xf32> -> vector<8x32xf32>
    %62 = arith.addf %60, %61 : vector<8x32xf32>
    %63 = math.tanh %62 : vector<8x32xf32>
    %64 = vector.extract_strided_slice %54 {offsets = [16, 0], sizes = [8, 32], strides = [1, 1]} : vector<64x32xf32> to vector<8x32xf32>
    %cst_37 = arith.constant dense<0.000000e+00> : vector<8x32xf32>
    %65 = tpu.matmul %63, %49, %cst_37 {dimension_numbers = #tpu.dot_dimension_numbers<[1], [0], [0], [1], [0, 0, 1, 1], [], []>} : vector<8x32xf32>, vector<32x32xf32>, vector<8x32xf32> -> vector<8x32xf32>
    %66 = arith.addf %64, %65 : vector<8x32xf32>
    %67 = math.tanh %66 : vector<8x32xf32>
    %68 = vector.extract_strided_slice %54 {offsets = [24, 0], sizes = [8, 32], strides = [1, 1]} : vector<64x32xf32> to vector<8x32xf32>
    %cst_38 = arith.constant dense<0.000000e+00> : vector<8x32xf32>
    %69 = tpu.matmul %67, %49, %cst_38 {dimension_numbers = #tpu.dot_dimension_numbers<[1], [0], [0], [1], [0, 0, 1, 1], [], []>} : vector<8x32xf32>, vector<32x32xf32>, vector<8x32xf32> -> vector<8x32xf32>
    %70 = arith.addf %68, %69 : vector<8x32xf32>
    %71 = math.tanh %70 : vector<8x32xf32>
    %72 = vector.extract_strided_slice %54 {offsets = [32, 0], sizes = [8, 32], strides = [1, 1]} : vector<64x32xf32> to vector<8x32xf32>
    %cst_39 = arith.constant dense<0.000000e+00> : vector<8x32xf32>
    %73 = tpu.matmul %71, %49, %cst_39 {dimension_numbers = #tpu.dot_dimension_numbers<[1], [0], [0], [1], [0, 0, 1, 1], [], []>} : vector<8x32xf32>, vector<32x32xf32>, vector<8x32xf32> -> vector<8x32xf32>
    %74 = arith.addf %72, %73 : vector<8x32xf32>
    %75 = math.tanh %74 : vector<8x32xf32>
    %76 = vector.extract_strided_slice %54 {offsets = [40, 0], sizes = [8, 32], strides = [1, 1]} : vector<64x32xf32> to vector<8x32xf32>
    %cst_40 = arith.constant dense<0.000000e+00> : vector<8x32xf32>
    %77 = tpu.matmul %75, %49, %cst_40 {dimension_numbers = #tpu.dot_dimension_numbers<[1], [0], [0], [1], [0, 0, 1, 1], [], []>} : vector<8x32xf32>, vector<32x32xf32>, vector<8x32xf32> -> vector<8x32xf32>
    %78 = arith.addf %76, %77 : vector<8x32xf32>
    %79 = math.tanh %78 : vector<8x32xf32>
    %80 = vector.extract_strided_slice %54 {offsets = [48, 0], sizes = [8, 32], strides = [1, 1]} : vector<64x32xf32> to vector<8x32xf32>
    %cst_41 = arith.constant dense<0.000000e+00> : vector<8x32xf32>
    %81 = tpu.matmul %79, %49, %cst_41 {dimension_numbers = #tpu.dot_dimension_numbers<[1], [0], [0], [1], [0, 0, 1, 1], [], []>} : vector<8x32xf32>, vector<32x32xf32>, vector<8x32xf32> -> vector<8x32xf32>
    %82 = arith.addf %80, %81 : vector<8x32xf32>
    %83 = math.tanh %82 : vector<8x32xf32>
    %84 = vector.extract_strided_slice %54 {offsets = [56, 0], sizes = [8, 32], strides = [1, 1]} : vector<64x32xf32> to vector<8x32xf32>
    %cst_42 = arith.constant dense<0.000000e+00> : vector<8x32xf32>
    %85 = tpu.matmul %83, %49, %cst_42 {dimension_numbers = #tpu.dot_dimension_numbers<[1], [0], [0], [1], [0, 0, 1, 1], [], []>} : vector<8x32xf32>, vector<32x32xf32>, vector<8x32xf32> -> vector<8x32xf32>
    %86 = arith.addf %84, %85 : vector<8x32xf32>
    %87 = math.tanh %86 : vector<8x32xf32>
    %c0_43 = arith.constant 0 : index
    %c0_44 = arith.constant 0 : index
    %88 = vector.load %arg7[%c0_43, %c0_44] : memref<32x128xf32, #tpu.memory_space<vmem>>, vector<32x128xf32>
    %cst_45 = arith.constant dense<0.000000e+00> : vector<8x128xf32>
    %89 = tpu.matmul %87, %88, %cst_45 {dimension_numbers = #tpu.dot_dimension_numbers<[1], [0], [0], [1], [0, 0, 1, 1], [], []>} : vector<8x32xf32>, vector<32x128xf32>, vector<8x128xf32> -> vector<8x128xf32>
    %c0_46 = arith.constant 0 : index
    %c0_47 = arith.constant 0 : index
    %90 = vector.load %arg8[%c0_46, %c0_47] : memref<1x128xf32, #tpu.memory_space<vmem>>, vector<1x128xf32>
    %91 = vector.broadcast %90 : vector<1x128xf32> to vector<8x128xf32>
    %92 = arith.addf %89, %91 : vector<8x128xf32>
    %c0_48 = arith.constant 0 : index
    %c0_49 = arith.constant 0 : index
    %93 = vector.load %arg9[%c0_48, %c0_49] : memref<8x128xf32, #tpu.memory_space<vmem>>, vector<8x128xf32>
    tpu.vector_store %arg9[%c0_48, %c0_49], %92 {strides = array<i32>} : memref<8x128xf32, #tpu.memory_space<vmem>>, vector<8x128xf32>,
    return
  }
}

</mosaic_0001>

<llo_original>
// kernel: my_rnn_forward.1
$region0: #{my_rnn_forward.1}
  #allocation0 [shape = 'u32[]', space=smem, size = 0x4, offset = 0x4, fixed_abs, tag = 'smem constant byte address 0x4 - core index']
  #allocation1 [shape = 'u32[144,128]{1,0:T(1,128)}', space=vmem, size = 0x12000, scoped, tag = 'internal scratch']
  #allocation2 [shape = 'f32[64,32]{1,0:T(8,128)}', space=vmem, size = 0x8000, scoped, tag = 'scratch operand']
  %s0 = inlined_call_operand.hbm [shape: f32[64,32], index: 0, kind: input, shape index: {}]
  %s1 = inlined_call_operand.hbm [shape: f32[32,32], index: 1, kind: input, shape index: {}]
  %s2 = inlined_call_operand.hbm [shape: f32[32,32], index: 2, kind: input, shape index: {}]
  %s3 = inlined_call_operand.vmem [shape: f32[1,32], index: 3, kind: input, shape index: {}]
  %s4 = inlined_call_operand.hbm [shape: f32[32,32], index: 4, kind: input, shape index: {}]
  %s5 = inlined_call_operand.hbm [shape: f32[32,32], index: 5, kind: input, shape index: {}]
  %s6 = inlined_call_operand.vmem [shape: f32[1,32], index: 6, kind: input, shape index: {}]
  %s7 = inlined_call_operand.hbm [shape: f32[32,128], index: 7, kind: input, shape index: {}]
  %s8 = inlined_call_operand.vmem [shape: f32[1,128], index: 8, kind: input, shape index: {}]
  %s9 = inlined_call_operand.vmem [shape: f32[8,128], index: 9, kind: output, shape index: {}]
  %s10 = sld [smem:[#allocation0]]
  $region70: #{my_rnn_forward.1} parent=0
    _
  %s12 = ssub.s32 1, %s10
  %s13 = scalar_select 0, %s12, %s10
  $region1: #{my_rnn_forward.1} parent=0
    #allocation3 [shape = 'u8[32768]{0}', space=vmem, size = 0x8000, scoped, tag = 'input window, operand 0, single buffered']
    #allocation4 [shape = 's32[1]{0}', space=sflag, size = 0x4, scoped, tag = 'scoped memory for my_rnn_forward.1']
    #allocation5 [shape = 'u8[16384]{0}', space=vmem, size = 0x4000, scoped, tag = 'input window, operand 1, single buffered']
    #allocation6 [shape = 's32[1]{0}', space=sflag, size = 0x4, scoped, tag = 'scoped memory for my_rnn_forward.1']
    #allocation7 [shape = 'u8[16384]{0}', space=vmem, size = 0x4000, scoped, tag = 'input window, operand 2, single buffered']
    #allocation8 [shape = 'u8[16384]{0}', space=vmem, size = 0x4000, scoped, tag = 'input window, operand 4, single buffered']
    #allocation9 [shape = 's32[1]{0}', space=sflag, size = 0x4, scoped, tag = 'scoped memory for my_rnn_forward.1']
    #allocation10 [shape = 'u8[16384]{0}', space=vmem, size = 0x4000, scoped, tag = 'input window, operand 5, single buffered']
    #allocation11 [shape = 'u8[16384]{0}', space=vmem, size = 0x4000, scoped, tag = 'input window, operand 7, single buffered']
    #allocation12 [shape = 's32[1]{0}', space=sflag, size = 0x4, scoped, tag = 'scoped memory for my_rnn_forward.1']
    %14 = vsyncpa [#allocation4], 0
    %15 = vsyncpa [#allocation6], 0
    %16 = vsyncpa [#allocation9], 0
    %17 = vsyncpa [#allocation12], 0
    // Predicated region
    $region2: #{my_rnn_forward.1} parent=1 // pred_check
      _
    $region3: #{my_rnn_forward.1} parent=1 // pred_check_branch
      %19 = sbr.rel (0) target = $region5
    $region4: #{my_rnn_forward.1} parent=1 // pred_region
      %s21 = ssub.s32 1024, 1024
      %22 = vsyncadd [#allocation4], %s21
      %s23 = sshll.u32 [#allocation3], 4
      %s24 = int_to_ptr.vmem [resolvable:$true] %s23
      %29 = dma.hbm_to_vmem [thread:$0]  %s0, 1024, %s24, [#allocation4], 128, 128, 8
    $region5: #{my_rnn_forward.1} parent=1 // pred_fallthru
      _
    // Predicated region
    $region6: #{my_rnn_forward.1} parent=1 // pred_check
      _
    $region7: #{my_rnn_forward.1} parent=1 // pred_check_branch
      %31 = sbr.rel (0) target = $region9
    $region8: #{my_rnn_forward.1} parent=1 // pred_region
      %s33 = ssub.s32 512, 512
      %34 = vsyncadd [#allocation6], %s33
      %s35 = sshll.u32 [#allocation5], 4
      %s36 = int_to_ptr.vmem [resolvable:$true] %s35
      %41 = dma.hbm_to_vmem [thread:$0]  %s1, 512, %s36, [#allocation6], 128, 128, 8
    $region9: #{my_rnn_forward.1} parent=1 // pred_fallthru
      _
    // Predicated region
    $region10: #{my_rnn_forward.1} parent=1 // pred_check
      _
    $region11: #{my_rnn_forward.1} parent=1 // pred_check_branch
      %43 = sbr.rel (0) target = $region13
    $region12: #{my_rnn_forward.1} parent=1 // pred_region
      %s45 = ssub.s32 512, 512
      %46 = vsyncadd [#allocation6], %s45
      %s47 = sshll.u32 [#allocation7], 4
      %s48 = int_to_ptr.vmem [resolvable:$true] %s47
      %53 = dma.hbm_to_vmem [thread:$0]  %s2, 512, %s48, [#allocation6], 128, 128, 8
    $region13: #{my_rnn_forward.1} parent=1 // pred_fallthru
      _
    // Predicated region
    $region14: #{my_rnn_forward.1} parent=1 // pred_check
      _
    $region15: #{my_rnn_forward.1} parent=1 // pred_check_branch
      %55 = sbr.rel (0) target = $region17
    $region16: #{my_rnn_forward.1} parent=1 // pred_region
      _
    $region17: #{my_rnn_forward.1} parent=1 // pred_fallthru
      _
    // Predicated region
    $region18: #{my_rnn_forward.1} parent=1 // pred_check
      _
    $region19: #{my_rnn_forward.1} parent=1 // pred_check_branch
      %57 = sbr.rel (0) target = $region21
    $region20: #{my_rnn_forward.1} parent=1 // pred_region
      %s59 = ssub.s32 512, 512
      %60 = vsyncadd [#allocation9], %s59
      %s61 = sshll.u32 [#allocation8], 4
      %s62 = int_to_ptr.vmem [resolvable:$true] %s61
      %67 = dma.hbm_to_vmem [thread:$0]  %s4, 512, %s62, [#allocation9], 128, 128, 8
    $region21: #{my_rnn_forward.1} parent=1 // pred_fallthru
      _
    // Predicated region
    $region22: #{my_rnn_forward.1} parent=1 // pred_check
      _
    $region23: #{my_rnn_forward.1} parent=1 // pred_check_branch
      %69 = sbr.rel (0) target = $region25
    $region24: #{my_rnn_forward.1} parent=1 // pred_region
      %s71 = ssub.s32 512, 512
      %72 = vsyncadd [#allocation9], %s71
      %s73 = sshll.u32 [#allocation10], 4
      %s74 = int_to_ptr.vmem [resolvable:$true] %s73
      %79 = dma.hbm_to_vmem [thread:$0]  %s5, 512, %s74, [#allocation9], 128, 128, 8
    $region25: #{my_rnn_forward.1} parent=1 // pred_fallthru
      _
    // Predicated region
    $region26: #{my_rnn_forward.1} parent=1 // pred_check
      _
    $region27: #{my_rnn_forward.1} parent=1 // pred_check_branch
      %81 = sbr.rel (0) target = $region29
    $region28: #{my_rnn_forward.1} parent=1 // pred_region
      _
    $region29: #{my_rnn_forward.1} parent=1 // pred_fallthru
      _
    // Predicated region
    $region30: #{my_rnn_forward.1} parent=1 // pred_check
      _
    $region31: #{my_rnn_forward.1} parent=1 // pred_check_branch
      %83 = sbr.rel (0) target = $region33
    $region32: #{my_rnn_forward.1} parent=1 // pred_region
      %s85 = ssub.s32 512, 512
      %86 = vsyncadd [#allocation12], %s85
      %s87 = sshll.u32 [#allocation11], 4
      %s88 = int_to_ptr.vmem [resolvable:$true] %s87
      %93 = dma.hbm_to_vmem [thread:$0]  %s7, 512, %s88, [#allocation12], 128, 128, 8
    $region33: #{my_rnn_forward.1} parent=1 // pred_fallthru
      _
    // Predicated region
    $region34: #{my_rnn_forward.1} parent=1 // pred_check
      _
    $region35: #{my_rnn_forward.1} parent=1 // pred_check_branch
      %95 = sbr.rel (0) target = $region37
    $region36: #{my_rnn_forward.1} parent=1 // pred_region
      _
    $region37: #{my_rnn_forward.1} parent=1 // pred_fallthru
      _
    // Predicated region
    $region38: #{my_rnn_forward.1} parent=1 // pred_check
      _
    $region39: #{my_rnn_forward.1} parent=1 // pred_check_branch
      %97 = sbr.rel (0) target = $region41
    $region40: #{my_rnn_forward.1} parent=1 // pred_region
      %98 = dma.done [#allocation4], 1024
    $region41: #{my_rnn_forward.1} parent=1 // pred_fallthru
      _
    // Predicated region
    $region42: #{my_rnn_forward.1} parent=1 // pred_check
      _
    $region43: #{my_rnn_forward.1} parent=1 // pred_check_branch
      %100 = sbr.rel (0) target = $region45
    $region44: #{my_rnn_forward.1} parent=1 // pred_region
      %101 = dma.done [#allocation6], 512
    $region45: #{my_rnn_forward.1} parent=1 // pred_fallthru
      _
    // Predicated region
    $region46: #{my_rnn_forward.1} parent=1 // pred_check
      _
    $region47: #{my_rnn_forward.1} parent=1 // pred_check_branch
      %103 = sbr.rel (0) target = $region49
    $region48: #{my_rnn_forward.1} parent=1 // pred_region
      %104 = dma.done [#allocation6], 512
    $region49: #{my_rnn_forward.1} parent=1 // pred_fallthru
      _
    // Predicated region
    $region50: #{my_rnn_forward.1} parent=1 // pred_check
      _
    $region51: #{my_rnn_forward.1} parent=1 // pred_check_branch
      %106 = sbr.rel (0) target = $region53
    $region52: #{my_rnn_forward.1} parent=1 // pred_region
      %107 = dma.done [#allocation9], 512
    $region53: #{my_rnn_forward.1} parent=1 // pred_fallthru
      _
    // Predicated region
    $region54: #{my_rnn_forward.1} parent=1 // pred_check
      _
    $region55: #{my_rnn_forward.1} parent=1 // pred_check_branch
      %109 = sbr.rel (0) target = $region57
    $region56: #{my_rnn_forward.1} parent=1 // pred_region
      %110 = dma.done [#allocation9], 512
    $region57: #{my_rnn_forward.1} parent=1 // pred_fallthru
      _
    // Predicated region
    $region58: #{my_rnn_forward.1} parent=1 // pred_check
      _
    $region59: #{my_rnn_forward.1} parent=1 // pred_check_branch
      %112 = sbr.rel (0) target = $region61
    $region60: #{my_rnn_forward.1} parent=1 // pred_region
      %113 = dma.done [#allocation12], 512
    $region61: #{my_rnn_forward.1} parent=1 // pred_fallthru
      _
    %v114 = vld [vmem:[#allocation5] sm:$0xff]
    %v115 = vld [vmem:[#allocation5 + $0x8] sm:$0xff]
    %v116 = vld [vmem:[#allocation5 + $0x10] sm:$0xff]
    %v117 = vld [vmem:[#allocation5 + $0x18] sm:$0xff]
    %v118 = vld [vmem:[#allocation7] sm:$0xff]
    %v119 = vld [vmem:[#allocation7 + $0x8] sm:$0xff]
    %v120 = vld [vmem:[#allocation7 + $0x10] sm:$0xff]
    %v121 = vld [vmem:[#allocation7 + $0x18] sm:$0xff]
    %v122 = vld [vmem:[%s3] sm:$0x1]
    %v123 = vld [vmem:[#allocation3] sm:$0xff]
    %v124 = vld [vmem:[#allocation3 + $0x8] sm:$0xff]
    %v125 = vld [vmem:[#allocation3 + $0x10] sm:$0xff]
    %v126 = vld [vmem:[#allocation3 + $0x18] sm:$0xff]
    %v127 = vld [vmem:[#allocation3 + $0x20] sm:$0xff]
    %v128 = vld [vmem:[#allocation3 + $0x28] sm:$0xff]
    %v129 = vld [vmem:[#allocation3 + $0x30] sm:$0xff]
    %v130 = vld [vmem:[#allocation3 + $0x38] sm:$0xff]
    %v132 = vlaneseq
    %v133 = vshrl.u32 %v132, 7
    %v134 = vsub.s32 0, %v133
    %v135 = vrot.slane %v122, %v134
    %vm137 = vcmask 261120
    %v139 = vsel %vm137, %v123, 0
    %v142 = vsel %vm137, %v124, 0
    %v145 = vsel %vm137, %v125, 0
    %v148 = vsel %vm137, %v126, 0
    %v151 = vsel %vm137, %v127, 0
    %v154 = vsel %vm137, %v128, 0
    %v157 = vsel %vm137, %v129, 0
    %v160 = vsel %vm137, %v130, 0
    %162 = vmatprep.subr.mxu0 0.0
    %163 = vmatpush1.msra.mxu0 %v114
    %164 = vmatprep.subr.mxu0 0.0
    %165 = vmatpush1.msra.mxu0 %v115
    %166 = vmatprep.subr.mxu0 0.0
    %167 = vmatpush1.msra.mxu0 %v116
    %168 = vmatprep.subr.mxu0 0.0
    %169 = vmatpush1.msra.mxu0 %v117
    %170 = vmatprep.subr.mxu0 0.0
    %171 = vmatpush1.msra.mxu0 0.0
    %172 = vmatprep.subr.mxu0 0.0
    %173 = vmatpush1.msra.mxu0 0.0
    %174 = vmatprep.subr.mxu0 0.0
    %175 = vmatpush1.msra.mxu0 0.0
    %176 = vmatprep.subr.mxu0 0.0
    %177 = vmatpush1.msra.mxu0 0.0
    %178 = vmatprep.subr.mxu0 0.0
    %179 = vmatpush1.msra.mxu0 0.0
    %180 = vmatprep.subr.mxu0 0.0
    %181 = vmatpush1.msra.mxu0 0.0
    %182 = vmatprep.subr.mxu0 0.0
    %183 = vmatpush1.msra.mxu0 0.0
    %184 = vmatprep.subr.mxu0 0.0
    %185 = vmatpush1.msra.mxu0 0.0
    %186 = vmatprep.subr.mxu0 0.0
    %187 = vmatpush1.msra.mxu0 0.0
    %188 = vmatprep.subr.mxu0 0.0
    %189 = vmatpush1.msra.mxu0 0.0
    %190 = vmatprep.subr.mxu0 0.0
    %191 = vmatpush1.msra.mxu0 0.0
    %192 = vmatprep.subr.mxu0 0.0
    %193 = vmatpush1.msra.mxu0 0.0
    %194 = vmatprep.subr.mxu0 0.0
    %195 = vmatpush1.msra.mxu0 0.0
    %196 = vmatprep.subr.mxu0 0.0
    %197 = vmatpush1.msra.mxu0 0.0
    %198 = vmatprep.subr.mxu0 0.0
    %199 = vmatpush1.msra.mxu0 0.0
    %200 = vmatprep.subr.mxu0 0.0
    %201 = vmatpush1.msra.mxu0 0.0
    %202 = vmatprep.subr.mxu0 0.0
    %203 = vmatpush1.msra.mxu0 0.0
    %204 = vmatprep.subr.mxu0 0.0
    %205 = vmatpush1.msra.mxu0 0.0
    %206 = vmatprep.subr.mxu0 0.0
    %207 = vmatpush1.msra.mxu0 0.0
    %208 = vmatprep.subr.mxu0 0.0
    %209 = vmatpush1.msra.mxu0 0.0
    %210 = vmatprep.subr.mxu0 0.0
    %211 = vmatpush1.msra.mxu0 0.0
    %212 = vmatprep.subr.mxu0 0.0
    %213 = vmatpush1.msra.mxu0 0.0
    %214 = vmatprep.subr.mxu0 0.0
    %215 = vmatpush1.msra.mxu0 0.0
    %216 = vmatprep.subr.mxu0 0.0
    %217 = vmatpush1.msra.mxu0 0.0
    %218 = vmatprep.subr.mxu0 0.0
    %219 = vmatpush1.msra.mxu0 0.0
    %220 = vmatprep.subr.mxu0 0.0
    %221 = vmatpush1.msra.mxu0 0.0
    %222 = vmatprep.subr.mxu0 0.0
    %223 = vmatpush1.msra.mxu0 0.0
    %224 = vmatprep.subr.mxu0 0.0
    %225 = vmatpush1.msra.mxu0 0.0
    %226 = vmatprep.mubr.f32.mxu0 0.0
    %227 = vmatmul.mubr.f32.gmra.mrb[0].mxu0 %v139
    %v228 = vpop.f32.mrb[0].mxu0
    %v229 = vadd.f32 %v135, %v228
    %v230 = vpop.f32.mrb[0].mxu0
    %231 = vmatprep.mubr.f32.mxu0 0.0
    %232 = vmatmul.mubr.f32.gmra.mrb[0].mxu0 %v142
    %v233 = vpop.f32.mrb[0].mxu0
    %v234 = vadd.f32 %v135, %v233
    %v235 = vpop.f32.mrb[0].mxu0
    %236 = vmatprep.mubr.f32.mxu0 0.0
    %237 = vmatmul.mubr.f32.gmra.mrb[0].mxu0 %v145
    %v238 = vpop.f32.mrb[0].mxu0
    %v239 = vadd.f32 %v135, %v238
    %v240 = vpop.f32.mrb[0].mxu0
    %241 = vmatprep.mubr.f32.mxu0 0.0
    %242 = vmatmul.mubr.f32.gmra.mrb[0].mxu0 %v148
    %v243 = vpop.f32.mrb[0].mxu0
    %v244 = vadd.f32 %v135, %v243
    %v245 = vpop.f32.mrb[0].mxu0
    %246 = vmatprep.mubr.f32.mxu0 0.0
    %247 = vmatmul.mubr.f32.gmra.mrb[0].mxu0 %v151
    %v248 = vpop.f32.mrb[0].mxu0
    %v249 = vadd.f32 %v135, %v248
    %v250 = vpop.f32.mrb[0].mxu0
    %251 = vmatprep.mubr.f32.mxu0 0.0
    %252 = vmatmul.mubr.f32.gmra.mrb[0].mxu0 %v154
    %v253 = vpop.f32.mrb[0].mxu0
    %v254 = vadd.f32 %v135, %v253
    %v255 = vpop.f32.mrb[0].mxu0
    %256 = vmatprep.mubr.f32.mxu0 0.0
    %257 = vmatmul.mubr.f32.gmra.mrb[0].mxu0 %v157
    %v258 = vpop.f32.mrb[0].mxu0
    %v259 = vadd.f32 %v135, %v258
    %v260 = vpop.f32.mrb[0].mxu0
    %261 = vmatprep.mubr.f32.mxu0 0.0
    %262 = vmatmul.mubr.f32.gmra.mrb[0].mxu0 %v160
    %v263 = vpop.f32.mrb[0].mxu0
    %v264 = vadd.f32 %v135, %v263
    %v265 = vpop.f32.mrb[0].mxu0
    %266 = vdwg.mxu0
    %v268 = vsel %vm137, 0.0, 0
    %270 = vmatprep.subr.mxu0 0.0
    %271 = vmatpush1.msra.mxu0 %v118
    %272 = vmatprep.subr.mxu0 0.0
    %273 = vmatpush1.msra.mxu0 %v119
    %274 = vmatprep.subr.mxu0 0.0
    %275 = vmatpush1.msra.mxu0 %v120
    %276 = vmatprep.subr.mxu0 0.0
    %277 = vmatpush1.msra.mxu0 %v121
    %278 = vmatprep.subr.mxu0 0.0
    %279 = vmatpush1.msra.mxu0 0.0
    %280 = vmatprep.subr.mxu0 0.0
    %281 = vmatpush1.msra.mxu0 0.0
    %282 = vmatprep.subr.mxu0 0.0
    %283 = vmatpush1.msra.mxu0 0.0
    %284 = vmatprep.subr.mxu0 0.0
    %285 = vmatpush1.msra.mxu0 0.0
    %286 = vmatprep.subr.mxu0 0.0
    %287 = vmatpush1.msra.mxu0 0.0
    %288 = vmatprep.subr.mxu0 0.0
    %289 = vmatpush1.msra.mxu0 0.0
    %290 = vmatprep.subr.mxu0 0.0
    %291 = vmatpush1.msra.mxu0 0.0
    %292 = vmatprep.subr.mxu0 0.0
    %293 = vmatpush1.msra.mxu0 0.0
    %294 = vmatprep.subr.mxu0 0.0
    %295 = vmatpush1.msra.mxu0 0.0
    %296 = vmatprep.subr.mxu0 0.0
    %297 = vmatpush1.msra.mxu0 0.0
    %298 = vmatprep.subr.mxu0 0.0
    %299 = vmatpush1.msra.mxu0 0.0
    %300 = vmatprep.subr.mxu0 0.0
    %301 = vmatpush1.msra.mxu0 0.0
    %302 = vmatprep.subr.mxu0 0.0
    %303 = vmatpush1.msra.mxu0 0.0
    %304 = vmatprep.subr.mxu0 0.0
    %305 = vmatpush1.msra.mxu0 0.0
    %306 = vmatprep.subr.mxu0 0.0
    %307 = vmatpush1.msra.mxu0 0.0
    %308 = vmatprep.subr.mxu0 0.0
    %309 = vmatpush1.msra.mxu0 0.0
    %310 = vmatprep.subr.mxu0 0.0
    %311 = vmatpush1.msra.mxu0 0.0
    %312 = vmatprep.subr.mxu0 0.0
    %313 = vmatpush1.msra.mxu0 0.0
    %314 = vmatprep.subr.mxu0 0.0
    %315 = vmatpush1.msra.mxu0 0.0
    %316 = vmatprep.subr.mxu0 0.0
    %317 = vmatpush1.msra.mxu0 0.0
    %318 = vmatprep.subr.mxu0 0.0
    %319 = vmatpush1.msra.mxu0 0.0
    %320 = vmatprep.subr.mxu0 0.0
    %321 = vmatpush1.msra.mxu0 0.0
    %322 = vmatprep.subr.mxu0 0.0
    %323 = vmatpush1.msra.mxu0 0.0
    %324 = vmatprep.subr.mxu0 0.0
    %325 = vmatpush1.msra.mxu0 0.0
    %326 = vmatprep.subr.mxu0 0.0
    %327 = vmatpush1.msra.mxu0 0.0
    %328 = vmatprep.subr.mxu0 0.0
    %329 = vmatpush1.msra.mxu0 0.0
    %330 = vmatprep.subr.mxu0 0.0
    %331 = vmatpush1.msra.mxu0 0.0
    %332 = vmatprep.subr.mxu0 0.0
    %333 = vmatpush1.msra.mxu0 0.0
    %334 = vmatprep.mubr.f32.mxu0 0.0
    %335 = vmatmul.mubr.f32.gmra.mrb[0].mxu0 %v268
    %v336 = vpop.f32.mrb[0].mxu0
    %v337 = vadd.f32 0.0, %v336
    %v338 = vpop.f32.mrb[0].mxu0
    %339 = vdwg.mxu0
    %v340 = vadd.f32 %v229, %v337
    %v341 = vtanh.pop %v340
    %342 = vst.msk [vmem:[#allocation2] sm:$0xff] %vm137, %v341
    %v344 = vsel %vm137, %v341, 0
    %346 = vmatprep.subr.mxu0 0.0
    %347 = vmatpush1.msra.mxu0 %v118
    %348 = vmatprep.subr.mxu0 0.0
    %349 = vmatpush1.msra.mxu0 %v119
    %350 = vmatprep.subr.mxu0 0.0
    %351 = vmatpush1.msra.mxu0 %v120
    %352 = vmatprep.subr.mxu0 0.0
    %353 = vmatpush1.msra.mxu0 %v121
    %354 = vmatprep.subr.mxu0 0.0
    %355 = vmatpush1.msra.mxu0 0.0
    %356 = vmatprep.subr.mxu0 0.0
    %357 = vmatpush1.msra.mxu0 0.0
    %358 = vmatprep.subr.mxu0 0.0
    %359 = vmatpush1.msra.mxu0 0.0
    %360 = vmatprep.subr.mxu0 0.0
    %361 = vmatpush1.msra.mxu0 0.0
    %362 = vmatprep.subr.mxu0 0.0
    %363 = vmatpush1.msra.mxu0 0.0
    %364 = vmatprep.subr.mxu0 0.0
    %365 = vmatpush1.msra.mxu0 0.0
    %366 = vmatprep.subr.mxu0 0.0
    %367 = vmatpush1.msra.mxu0 0.0
    %368 = vmatprep.subr.mxu0 0.0
    %369 = vmatpush1.msra.mxu0 0.0
    %370 = vmatprep.subr.mxu0 0.0
    %371 = vmatpush1.msra.mxu0 0.0
    %372 = vmatprep.subr.mxu0 0.0
    %373 = vmatpush1.msra.mxu0 0.0
    %374 = vmatprep.subr.mxu0 0.0
    %375 = vmatpush1.msra.mxu0 0.0
    %376 = vmatprep.subr.mxu0 0.0
    %377 = vmatpush1.msra.mxu0 0.0
    %378 = vmatprep.subr.mxu0 0.0
    %379 = vmatpush1.msra.mxu0 0.0
    %380 = vmatprep.subr.mxu0 0.0
    %381 = vmatpush1.msra.mxu0 0.0
    %382 = vmatprep.subr.mxu0 0.0
    %383 = vmatpush1.msra.mxu0 0.0
    %384 = vmatprep.subr.mxu0 0.0
    %385 = vmatpush1.msra.mxu0 0.0
    %386 = vmatprep.subr.mxu0 0.0
    %387 = vmatpush1.msra.mxu0 0.0
    %388 = vmatprep.subr.mxu0 0.0
    %389 = vmatpush1.msra.mxu0 0.0
    %390 = vmatprep.subr.mxu0 0.0
    %391 = vmatpush1.msra.mxu0 0.0
    %392 = vmatprep.subr.mxu0 0.0
    %393 = vmatpush1.msra.mxu0 0.0
    %394 = vmatprep.subr.mxu0 0.0
    %395 = vmatpush1.msra.mxu0 0.0
    %396 = vmatprep.subr.mxu0 0.0
    %397 = vmatpush1.msra.mxu0 0.0
    %398 = vmatprep.subr.mxu0 0.0
    %399 = vmatpush1.msra.mxu0 0.0
    %400 = vmatprep.subr.mxu0 0.0
    %401 = vmatpush1.msra.mxu0 0.0
    %402 = vmatprep.subr.mxu0 0.0
    %403 = vmatpush1.msra.mxu0 0.0
    %404 = vmatprep.subr.mxu0 0.0
    %405 = vmatpush1.msra.mxu0 0.0
    %406 = vmatprep.subr.mxu0 0.0
    %407 = vmatpush1.msra.mxu0 0.0
    %408 = vmatprep.subr.mxu0 0.0
    %409 = vmatpush1.msra.mxu0 0.0
    %410 = vmatprep.mubr.f32.mxu0 0.0
    %411 = vmatmul.mubr.f32.gmra.mrb[0].mxu0 %v344
    %v412 = vpop.f32.mrb[0].mxu0
    %v413 = vadd.f32 0.0, %v412
    %v414 = vpop.f32.mrb[0].mxu0
    %415 = vdwg.mxu0
    %v416 = vadd.f32 %v234, %v413
    %v417 = vtanh.pop %v416
    %418 = vst.msk [vmem:[#allocation2 + $0x8] sm:$0xff] %vm137, %v417
    %v420 = vsel %vm137, %v417, 0
    %422 = vmatprep.subr.mxu0 0.0
    %423 = vmatpush1.msra.mxu0 %v118
    %424 = vmatprep.subr.mxu0 0.0
    %425 = vmatpush1.msra.mxu0 %v119
    %426 = vmatprep.subr.mxu0 0.0
    %427 = vmatpush1.msra.mxu0 %v120
    %428 = vmatprep.subr.mxu0 0.0
    %429 = vmatpush1.msra.mxu0 %v121
    %430 = vmatprep.subr.mxu0 0.0
    %431 = vmatpush1.msra.mxu0 0.0
    %432 = vmatprep.subr.mxu0 0.0
    %433 = vmatpush1.msra.mxu0 0.0
    %434 = vmatprep.subr.mxu0 0.0
    %435 = vmatpush1.msra.mxu0 0.0
    %436 = vmatprep.subr.mxu0 0.0
    %437 = vmatpush1.msra.mxu0 0.0
    %438 = vmatprep.subr.mxu0 0.0
    %439 = vmatpush1.msra.mxu0 0.0
    %440 = vmatprep.subr.mxu0 0.0
    %441 = vmatpush1.msra.mxu0 0.0
    %442 = vmatprep.subr.mxu0 0.0
    %443 = vmatpush1.msra.mxu0 0.0
    %444 = vmatprep.subr.mxu0 0.0
    %445 = vmatpush1.msra.mxu0 0.0
    %446 = vmatprep.subr.mxu0 0.0
    %447 = vmatpush1.msra.mxu0 0.0
    %448 = vmatprep.subr.mxu0 0.0
    %449 = vmatpush1.msra.mxu0 0.0
    %450 = vmatprep.subr.mxu0 0.0
    %451 = vmatpush1.msra.mxu0 0.0
    %452 = vmatprep.subr.mxu0 0.0
    %453 = vmatpush1.msra.mxu0 0.0
    %454 = vmatprep.subr.mxu0 0.0
    %455 = vmatpush1.msra.mxu0 0.0
    %456 = vmatprep.subr.mxu0 0.0
    %457 = vmatpush1.msra.mxu0 0.0
    %458 = vmatprep.subr.mxu0 0.0
    %459 = vmatpush1.msra.mxu0 0.0
    %460 = vmatprep.subr.mxu0 0.0
    %461 = vmatpush1.msra.mxu0 0.0
    %462 = vmatprep.subr.mxu0 0.0
    %463 = vmatpush1.msra.mxu0 0.0
    %464 = vmatprep.subr.mxu0 0.0
    %465 = vmatpush1.msra.mxu0 0.0
    %466 = vmatprep.subr.mxu0 0.0
    %467 = vmatpush1.msra.mxu0 0.0
    %468 = vmatprep.subr.mxu0 0.0
    %469 = vmatpush1.msra.mxu0 0.0
    %470 = vmatprep.subr.mxu0 0.0
    %471 = vmatpush1.msra.mxu0 0.0
    %472 = vmatprep.subr.mxu0 0.0
    %473 = vmatpush1.msra.mxu0 0.0
    %474 = vmatprep.subr.mxu0 0.0
    %475 = vmatpush1.msra.mxu0 0.0
    %476 = vmatprep.subr.mxu0 0.0
    %477 = vmatpush1.msra.mxu0 0.0
    %478 = vmatprep.subr.mxu0 0.0
    %479 = vmatpush1.msra.mxu0 0.0
    %480 = vmatprep.subr.mxu0 0.0
    %481 = vmatpush1.msra.mxu0 0.0
    %482 = vmatprep.subr.mxu0 0.0
    %483 = vmatpush1.msra.mxu0 0.0
    %484 = vmatprep.subr.mxu0 0.0
    %485 = vmatpush1.msra.mxu0 0.0
    %486 = vmatprep.mubr.f32.mxu0 0.0
    %487 = vmatmul.mubr.f32.gmra.mrb[0].mxu0 %v420
    %v488 = vpop.f32.mrb[0].mxu0
    %v489 = vadd.f32 0.0, %v488
    %v490 = vpop.f32.mrb[0].mxu0
    %491 = vdwg.mxu0
    %v492 = vadd.f32 %v239, %v489
    %v493 = vtanh.pop %v492
    %494 = vst.msk [vmem:[#allocation2 + $0x10] sm:$0xff] %vm137, %v493
    %v496 = vsel %vm137, %v493, 0
    %498 = vmatprep.subr.mxu0 0.0
    %499 = vmatpush1.msra.mxu0 %v118
    %500 = vmatprep.subr.mxu0 0.0
    %501 = vmatpush1.msra.mxu0 %v119
    %502 = vmatprep.subr.mxu0 0.0
    %503 = vmatpush1.msra.mxu0 %v120
    %504 = vmatprep.subr.mxu0 0.0
    %505 = vmatpush1.msra.mxu0 %v121
    %506 = vmatprep.subr.mxu0 0.0
    %507 = vmatpush1.msra.mxu0 0.0
    %508 = vmatprep.subr.mxu0 0.0
    %509 = vmatpush1.msra.mxu0 0.0
    %510 = vmatprep.subr.mxu0 0.0
    %511 = vmatpush1.msra.mxu0 0.0
    %512 = vmatprep.subr.mxu0 0.0
    %513 = vmatpush1.msra.mxu0 0.0
    %514 = vmatprep.subr.mxu0 0.0
    %515 = vmatpush1.msra.mxu0 0.0
    %516 = vmatprep.subr.mxu0 0.0
    %517 = vmatpush1.msra.mxu0 0.0
    %518 = vmatprep.subr.mxu0 0.0
    %519 = vmatpush1.msra.mxu0 0.0
    %520 = vmatprep.subr.mxu0 0.0
    %521 = vmatpush1.msra.mxu0 0.0
    %522 = vmatprep.subr.mxu0 0.0
    %523 = vmatpush1.msra.mxu0 0.0
    %524 = vmatprep.subr.mxu0 0.0
    %525 = vmatpush1.msra.mxu0 0.0
    %526 = vmatprep.subr.mxu0 0.0
    %527 = vmatpush1.msra.mxu0 0.0
    %528 = vmatprep.subr.mxu0 0.0
    %529 = vmatpush1.msra.mxu0 0.0
    %530 = vmatprep.subr.mxu0 0.0
    %531 = vmatpush1.msra.mxu0 0.0
    %532 = vmatprep.subr.mxu0 0.0
    %533 = vmatpush1.msra.mxu0 0.0
    %534 = vmatprep.subr.mxu0 0.0
    %535 = vmatpush1.msra.mxu0 0.0
    %536 = vmatprep.subr.mxu0 0.0
    %537 = vmatpush1.msra.mxu0 0.0
    %538 = vmatprep.subr.mxu0 0.0
    %539 = vmatpush1.msra.mxu0 0.0
    %540 = vmatprep.subr.mxu0 0.0
    %541 = vmatpush1.msra.mxu0 0.0
    %542 = vmatprep.subr.mxu0 0.0
    %543 = vmatpush1.msra.mxu0 0.0
    %544 = vmatprep.subr.mxu0 0.0
    %545 = vmatpush1.msra.mxu0 0.0
    %546 = vmatprep.subr.mxu0 0.0
    %547 = vmatpush1.msra.mxu0 0.0
    %548 = vmatprep.subr.mxu0 0.0
    %549 = vmatpush1.msra.mxu0 0.0
    %550 = vmatprep.subr.mxu0 0.0
    %551 = vmatpush1.msra.mxu0 0.0
    %552 = vmatprep.subr.mxu0 0.0
    %553 = vmatpush1.msra.mxu0 0.0
    %554 = vmatprep.subr.mxu0 0.0
    %555 = vmatpush1.msra.mxu0 0.0
    %556 = vmatprep.subr.mxu0 0.0
    %557 = vmatpush1.msra.mxu0 0.0
    %558 = vmatprep.subr.mxu0 0.0
    %559 = vmatpush1.msra.mxu0 0.0
    %560 = vmatprep.subr.mxu0 0.0
    %561 = vmatpush1.msra.mxu0 0.0
    %562 = vmatprep.mubr.f32.mxu0 0.0
    %563 = vmatmul.mubr.f32.gmra.mrb[0].mxu0 %v496
    %v564 = vpop.f32.mrb[0].mxu0
    %v565 = vadd.f32 0.0, %v564
    %v566 = vpop.f32.mrb[0].mxu0
    %567 = vdwg.mxu0
    %v568 = vadd.f32 %v244, %v565
    %v569 = vtanh.pop %v568
    %570 = vst.msk [vmem:[#allocation2 + $0x18] sm:$0xff] %vm137, %v569
    %v572 = vsel %vm137, %v569, 0
    %574 = vmatprep.subr.mxu0 0.0
    %575 = vmatpush1.msra.mxu0 %v118
    %576 = vmatprep.subr.mxu0 0.0
    %577 = vmatpush1.msra.mxu0 %v119
    %578 = vmatprep.subr.mxu0 0.0
    %579 = vmatpush1.msra.mxu0 %v120
    %580 = vmatprep.subr.mxu0 0.0
    %581 = vmatpush1.msra.mxu0 %v121
    %582 = vmatprep.subr.mxu0 0.0
    %583 = vmatpush1.msra.mxu0 0.0
    %584 = vmatprep.subr.mxu0 0.0
    %585 = vmatpush1.msra.mxu0 0.0
    %586 = vmatprep.subr.mxu0 0.0
    %587 = vmatpush1.msra.mxu0 0.0
    %588 = vmatprep.subr.mxu0 0.0
    %589 = vmatpush1.msra.mxu0 0.0
    %590 = vmatprep.subr.mxu0 0.0
    %591 = vmatpush1.msra.mxu0 0.0
    %592 = vmatprep.subr.mxu0 0.0
    %593 = vmatpush1.msra.mxu0 0.0
    %594 = vmatprep.subr.mxu0 0.0
    %595 = vmatpush1.msra.mxu0 0.0
    %596 = vmatprep.subr.mxu0 0.0
    %597 = vmatpush1.msra.mxu0 0.0
    %598 = vmatprep.subr.mxu0 0.0
    %599 = vmatpush1.msra.mxu0 0.0
    %600 = vmatprep.subr.mxu0 0.0
    %601 = vmatpush1.msra.mxu0 0.0
    %602 = vmatprep.subr.mxu0 0.0
    %603 = vmatpush1.msra.mxu0 0.0
    %604 = vmatprep.subr.mxu0 0.0
    %605 = vmatpush1.msra.mxu0 0.0
    %606 = vmatprep.subr.mxu0 0.0
    %607 = vmatpush1.msra.mxu0 0.0
    %608 = vmatprep.subr.mxu0 0.0
    %609 = vmatpush1.msra.mxu0 0.0
    %610 = vmatprep.subr.mxu0 0.0
    %611 = vmatpush1.msra.mxu0 0.0
    %612 = vmatprep.subr.mxu0 0.0
    %613 = vmatpush1.msra.mxu0 0.0
    %614 = vmatprep.subr.mxu0 0.0
    %615 = vmatpush1.msra.mxu0 0.0
    %616 = vmatprep.subr.mxu0 0.0
    %617 = vmatpush1.msra.mxu0 0.0
    %618 = vmatprep.subr.mxu0 0.0
    %619 = vmatpush1.msra.mxu0 0.0
    %620 = vmatprep.subr.mxu0 0.0
    %621 = vmatpush1.msra.mxu0 0.0
    %622 = vmatprep.subr.mxu0 0.0
    %623 = vmatpush1.msra.mxu0 0.0
    %624 = vmatprep.subr.mxu0 0.0
    %625 = vmatpush1.msra.mxu0 0.0
    %626 = vmatprep.subr.mxu0 0.0
    %627 = vmatpush1.msra.mxu0 0.0
    %628 = vmatprep.subr.mxu0 0.0
    %629 = vmatpush1.msra.mxu0 0.0
    %630 = vmatprep.subr.mxu0 0.0
    %631 = vmatpush1.msra.mxu0 0.0
    %632 = vmatprep.subr.mxu0 0.0
    %633 = vmatpush1.msra.mxu0 0.0
    %634 = vmatprep.subr.mxu0 0.0
    %635 = vmatpush1.msra.mxu0 0.0
    %636 = vmatprep.subr.mxu0 0.0
    %637 = vmatpush1.msra.mxu0 0.0
    %638 = vmatprep.mubr.f32.mxu0 0.0
    %639 = vmatmul.mubr.f32.gmra.mrb[0].mxu0 %v572
    %v640 = vpop.f32.mrb[0].mxu0
    %v641 = vadd.f32 0.0, %v640
    %v642 = vpop.f32.mrb[0].mxu0
    %643 = vdwg.mxu0
    %v644 = vadd.f32 %v249, %v641
    %v645 = vtanh.pop %v644
    %646 = vst.msk [vmem:[#allocation2 + $0x20] sm:$0xff] %vm137, %v645
    %v648 = vsel %vm137, %v645, 0
    %650 = vmatprep.subr.mxu0 0.0
    %651 = vmatpush1.msra.mxu0 %v118
    %652 = vmatprep.subr.mxu0 0.0
    %653 = vmatpush1.msra.mxu0 %v119
    %654 = vmatprep.subr.mxu0 0.0
    %655 = vmatpush1.msra.mxu0 %v120
    %656 = vmatprep.subr.mxu0 0.0
    %657 = vmatpush1.msra.mxu0 %v121
    %658 = vmatprep.subr.mxu0 0.0
    %659 = vmatpush1.msra.mxu0 0.0
    %660 = vmatprep.subr.mxu0 0.0
    %661 = vmatpush1.msra.mxu0 0.0
    %662 = vmatprep.subr.mxu0 0.0
    %663 = vmatpush1.msra.mxu0 0.0
    %664 = vmatprep.subr.mxu0 0.0
    %665 = vmatpush1.msra.mxu0 0.0
    %666 = vmatprep.subr.mxu0 0.0
    %667 = vmatpush1.msra.mxu0 0.0
    %668 = vmatprep.subr.mxu0 0.0
    %669 = vmatpush1.msra.mxu0 0.0
    %670 = vmatprep.subr.mxu0 0.0
    %671 = vmatpush1.msra.mxu0 0.0
    %672 = vmatprep.subr.mxu0 0.0
    %673 = vmatpush1.msra.mxu0 0.0
    %674 = vmatprep.subr.mxu0 0.0
    %675 = vmatpush1.msra.mxu0 0.0
    %676 = vmatprep.subr.mxu0 0.0
    %677 = vmatpush1.msra.mxu0 0.0
    %678 = vmatprep.subr.mxu0 0.0
    %679 = vmatpush1.msra.mxu0 0.0
    %680 = vmatprep.subr.mxu0 0.0
    %681 = vmatpush1.msra.mxu0 0.0
    %682 = vmatprep.subr.mxu0 0.0
    %683 = vmatpush1.msra.mxu0 0.0
    %684 = vmatprep.subr.mxu0 0.0
    %685 = vmatpush1.msra.mxu0 0.0
    %686 = vmatprep.subr.mxu0 0.0
    %687 = vmatpush1.msra.mxu0 0.0
    %688 = vmatprep.subr.mxu0 0.0
    %689 = vmatpush1.msra.mxu0 0.0
    %690 = vmatprep.subr.mxu0 0.0
    %691 = vmatpush1.msra.mxu0 0.0
    %692 = vmatprep.subr.mxu0 0.0
    %693 = vmatpush1.msra.mxu0 0.0
    %694 = vmatprep.subr.mxu0 0.0
    %695 = vmatpush1.msra.mxu0 0.0
    %696 = vmatprep.subr.mxu0 0.0
    %697 = vmatpush1.msra.mxu0 0.0
    %698 = vmatprep.subr.mxu0 0.0
    %699 = vmatpush1.msra.mxu0 0.0
    %700 = vmatprep.subr.mxu0 0.0
    %701 = vmatpush1.msra.mxu0 0.0
    %702 = vmatprep.subr.mxu0 0.0
    %703 = vmatpush1.msra.mxu0 0.0
    %704 = vmatprep.subr.mxu0 0.0
    %705 = vmatpush1.msra.mxu0 0.0
    %706 = vmatprep.subr.mxu0 0.0
    %707 = vmatpush1.msra.mxu0 0.0
    %708 = vmatprep.subr.mxu0 0.0
    %709 = vmatpush1.msra.mxu0 0.0
    %710 = vmatprep.subr.mxu0 0.0
    %711 = vmatpush1.msra.mxu0 0.0
    %712 = vmatprep.subr.mxu0 0.0
    %713 = vmatpush1.msra.mxu0 0.0
    %714 = vmatprep.mubr.f32.mxu0 0.0
    %715 = vmatmul.mubr.f32.gmra.mrb[0].mxu0 %v648
    %v716 = vpop.f32.mrb[0].mxu0
    %v717 = vadd.f32 0.0, %v716
    %v718 = vpop.f32.mrb[0].mxu0
    %719 = vdwg.mxu0
    %v720 = vadd.f32 %v254, %v717
    %v721 = vtanh.pop %v720
    %722 = vst.msk [vmem:[#allocation2 + $0x28] sm:$0xff] %vm137, %v721
    %v724 = vsel %vm137, %v721, 0
    %726 = vmatprep.subr.mxu0 0.0
    %727 = vmatpush1.msra.mxu0 %v118
    %728 = vmatprep.subr.mxu0 0.0
    %729 = vmatpush1.msra.mxu0 %v119
    %730 = vmatprep.subr.mxu0 0.0
    %731 = vmatpush1.msra.mxu0 %v120
    %732 = vmatprep.subr.mxu0 0.0
    %733 = vmatpush1.msra.mxu0 %v121
    %734 = vmatprep.subr.mxu0 0.0
    %735 = vmatpush1.msra.mxu0 0.0
    %736 = vmatprep.subr.mxu0 0.0
    %737 = vmatpush1.msra.mxu0 0.0
    %738 = vmatprep.subr.mxu0 0.0
    %739 = vmatpush1.msra.mxu0 0.0
    %740 = vmatprep.subr.mxu0 0.0
    %741 = vmatpush1.msra.mxu0 0.0
    %742 = vmatprep.subr.mxu0 0.0
    %743 = vmatpush1.msra.mxu0 0.0
    %744 = vmatprep.subr.mxu0 0.0
    %745 = vmatpush1.msra.mxu0 0.0
    %746 = vmatprep.subr.mxu0 0.0
    %747 = vmatpush1.msra.mxu0 0.0
    %748 = vmatprep.subr.mxu0 0.0
    %749 = vmatpush1.msra.mxu0 0.0
    %750 = vmatprep.subr.mxu0 0.0
    %751 = vmatpush1.msra.mxu0 0.0
    %752 = vmatprep.subr.mxu0 0.0
    %753 = vmatpush1.msra.mxu0 0.0
    %754 = vmatprep.subr.mxu0 0.0
    %755 = vmatpush1.msra.mxu0 0.0
    %756 = vmatprep.subr.mxu0 0.0
    %757 = vmatpush1.msra.mxu0 0.0
    %758 = vmatprep.subr.mxu0 0.0
    %759 = vmatpush1.msra.mxu0 0.0
    %760 = vmatprep.subr.mxu0 0.0
    %761 = vmatpush1.msra.mxu0 0.0
    %762 = vmatprep.subr.mxu0 0.0
    %763 = vmatpush1.msra.mxu0 0.0
    %764 = vmatprep.subr.mxu0 0.0
    %765 = vmatpush1.msra.mxu0 0.0
    %766 = vmatprep.subr.mxu0 0.0
    %767 = vmatpush1.msra.mxu0 0.0
    %768 = vmatprep.subr.mxu0 0.0
    %769 = vmatpush1.msra.mxu0 0.0
    %770 = vmatprep.subr.mxu0 0.0
    %771 = vmatpush1.msra.mxu0 0.0
    %772 = vmatprep.subr.mxu0 0.0
    %773 = vmatpush1.msra.mxu0 0.0
    %774 = vmatprep.subr.mxu0 0.0
    %775 = vmatpush1.msra.mxu0 0.0
    %776 = vmatprep.subr.mxu0 0.0
    %777 = vmatpush1.msra.mxu0 0.0
    %778 = vmatprep.subr.mxu0 0.0
    %779 = vmatpush1.msra.mxu0 0.0
    %780 = vmatprep.subr.mxu0 0.0
    %781 = vmatpush1.msra.mxu0 0.0
    %782 = vmatprep.subr.mxu0 0.0
    %783 = vmatpush1.msra.mxu0 0.0
    %784 = vmatprep.subr.mxu0 0.0
    %785 = vmatpush1.msra.mxu0 0.0
    %786 = vmatprep.subr.mxu0 0.0
    %787 = vmatpush1.msra.mxu0 0.0
    %788 = vmatprep.subr.mxu0 0.0
    %789 = vmatpush1.msra.mxu0 0.0
    %790 = vmatprep.mubr.f32.mxu0 0.0
    %791 = vmatmul.mubr.f32.gmra.mrb[0].mxu0 %v724
    %v792 = vpop.f32.mrb[0].mxu0
    %v793 = vadd.f32 0.0, %v792
    %v794 = vpop.f32.mrb[0].mxu0
    %795 = vdwg.mxu0
    %v796 = vadd.f32 %v259, %v793
    %v797 = vtanh.pop %v796
    %798 = vst.msk [vmem:[#allocation2 + $0x30] sm:$0xff] %vm137, %v797
    %v800 = vsel %vm137, %v797, 0
    %802 = vmatprep.subr.mxu0 0.0
    %803 = vmatpush1.msra.mxu0 %v118
    %804 = vmatprep.subr.mxu0 0.0
    %805 = vmatpush1.msra.mxu0 %v119
    %806 = vmatprep.subr.mxu0 0.0
    %807 = vmatpush1.msra.mxu0 %v120
    %808 = vmatprep.subr.mxu0 0.0
    %809 = vmatpush1.msra.mxu0 %v121
    %810 = vmatprep.subr.mxu0 0.0
    %811 = vmatpush1.msra.mxu0 0.0
    %812 = vmatprep.subr.mxu0 0.0
    %813 = vmatpush1.msra.mxu0 0.0
    %814 = vmatprep.subr.mxu0 0.0
    %815 = vmatpush1.msra.mxu0 0.0
    %816 = vmatprep.subr.mxu0 0.0
    %817 = vmatpush1.msra.mxu0 0.0
    %818 = vmatprep.subr.mxu0 0.0
    %819 = vmatpush1.msra.mxu0 0.0
    %820 = vmatprep.subr.mxu0 0.0
    %821 = vmatpush1.msra.mxu0 0.0
    %822 = vmatprep.subr.mxu0 0.0
    %823 = vmatpush1.msra.mxu0 0.0
    %824 = vmatprep.subr.mxu0 0.0
    %825 = vmatpush1.msra.mxu0 0.0
    %826 = vmatprep.subr.mxu0 0.0
    %827 = vmatpush1.msra.mxu0 0.0
    %828 = vmatprep.subr.mxu0 0.0
    %829 = vmatpush1.msra.mxu0 0.0
    %830 = vmatprep.subr.mxu0 0.0
    %831 = vmatpush1.msra.mxu0 0.0
    %832 = vmatprep.subr.mxu0 0.0
    %833 = vmatpush1.msra.mxu0 0.0
    %834 = vmatprep.subr.mxu0 0.0
    %835 = vmatpush1.msra.mxu0 0.0
    %836 = vmatprep.subr.mxu0 0.0
    %837 = vmatpush1.msra.mxu0 0.0
    %838 = vmatprep.subr.mxu0 0.0
    %839 = vmatpush1.msra.mxu0 0.0
    %840 = vmatprep.subr.mxu0 0.0
    %841 = vmatpush1.msra.mxu0 0.0
    %842 = vmatprep.subr.mxu0 0.0
    %843 = vmatpush1.msra.mxu0 0.0
    %844 = vmatprep.subr.mxu0 0.0
    %845 = vmatpush1.msra.mxu0 0.0
    %846 = vmatprep.subr.mxu0 0.0
    %847 = vmatpush1.msra.mxu0 0.0
    %848 = vmatprep.subr.mxu0 0.0
    %849 = vmatpush1.msra.mxu0 0.0
    %850 = vmatprep.subr.mxu0 0.0
    %851 = vmatpush1.msra.mxu0 0.0
    %852 = vmatprep.subr.mxu0 0.0
    %853 = vmatpush1.msra.mxu0 0.0
    %854 = vmatprep.subr.mxu0 0.0
    %855 = vmatpush1.msra.mxu0 0.0
    %856 = vmatprep.subr.mxu0 0.0
    %857 = vmatpush1.msra.mxu0 0.0
    %858 = vmatprep.subr.mxu0 0.0
    %859 = vmatpush1.msra.mxu0 0.0
    %860 = vmatprep.subr.mxu0 0.0
    %861 = vmatpush1.msra.mxu0 0.0
    %862 = vmatprep.subr.mxu0 0.0
    %863 = vmatpush1.msra.mxu0 0.0
    %864 = vmatprep.subr.mxu0 0.0
    %865 = vmatpush1.msra.mxu0 0.0
    %866 = vmatprep.mubr.f32.mxu0 0.0
    %867 = vmatmul.mubr.f32.gmra.mrb[0].mxu0 %v800
    %v868 = vpop.f32.mrb[0].mxu0
    %v869 = vadd.f32 0.0, %v868
    %v870 = vpop.f32.mrb[0].mxu0
    %871 = vdwg.mxu0
    %v872 = vadd.f32 %v264, %v869
    %v873 = vtanh.pop %v872
    %874 = vst.msk [vmem:[#allocation2 + $0x38] sm:$0xff] %vm137, %v873
    %v875 = vld [vmem:[#allocation8] sm:$0xff]
    %v876 = vld [vmem:[#allocation8 + $0x8] sm:$0xff]
    %v877 = vld [vmem:[#allocation8 + $0x10] sm:$0xff]
    %v878 = vld [vmem:[#allocation8 + $0x18] sm:$0xff]
    %v879 = vld [vmem:[#allocation10] sm:$0xff]
    %v880 = vld [vmem:[#allocation10 + $0x8] sm:$0xff]
    %v881 = vld [vmem:[#allocation10 + $0x10] sm:$0xff]
    %v882 = vld [vmem:[#allocation10 + $0x18] sm:$0xff]
    %v883 = vld [vmem:[%s6] sm:$0x1]
    %v884 = vld [vmem:[#allocation2] sm:$0xff]
    %v885 = vld [vmem:[#allocation2 + $0x8] sm:$0xff]
    %v886 = vld [vmem:[#allocation2 + $0x10] sm:$0xff]
    %v887 = vld [vmem:[#allocation2 + $0x18] sm:$0xff]
    %v888 = vld [vmem:[#allocation2 + $0x20] sm:$0xff]
    %v889 = vld [vmem:[#allocation2 + $0x28] sm:$0xff]
    %v890 = vld [vmem:[#allocation2 + $0x30] sm:$0xff]
    %v891 = vld [vmem:[#allocation2 + $0x38] sm:$0xff]
    %v893 = vlaneseq
    %v894 = vshrl.u32 %v893, 7
    %v895 = vsub.s32 0, %v894
    %v896 = vrot.slane %v883, %v895
    %v899 = vsel %vm137, %v884, 0
    %v902 = vsel %vm137, %v885, 0
    %v905 = vsel %vm137, %v886, 0
    %v908 = vsel %vm137, %v887, 0
    %v911 = vsel %vm137, %v888, 0
    %v914 = vsel %vm137, %v889, 0
    %v917 = vsel %vm137, %v890, 0
    %v920 = vsel %vm137, %v891, 0
    %922 = vmatprep.subr.mxu0 0.0
    %923 = vmatpush1.msra.mxu0 %v875
    %924 = vmatprep.subr.mxu0 0.0
    %925 = vmatpush1.msra.mxu0 %v876
    %926 = vmatprep.subr.mxu0 0.0
    %927 = vmatpush1.msra.mxu0 %v877
    %928 = vmatprep.subr.mxu0 0.0
    %929 = vmatpush1.msra.mxu0 %v878
    %930 = vmatprep.subr.mxu0 0.0
    %931 = vmatpush1.msra.mxu0 0.0
    %932 = vmatprep.subr.mxu0 0.0
    %933 = vmatpush1.msra.mxu0 0.0
    %934 = vmatprep.subr.mxu0 0.0
    %935 = vmatpush1.msra.mxu0 0.0
    %936 = vmatprep.subr.mxu0 0.0
    %937 = vmatpush1.msra.mxu0 0.0
    %938 = vmatprep.subr.mxu0 0.0
    %939 = vmatpush1.msra.mxu0 0.0
    %940 = vmatprep.subr.mxu0 0.0
    %941 = vmatpush1.msra.mxu0 0.0
    %942 = vmatprep.subr.mxu0 0.0
    %943 = vmatpush1.msra.mxu0 0.0
    %944 = vmatprep.subr.mxu0 0.0
    %945 = vmatpush1.msra.mxu0 0.0
    %946 = vmatprep.subr.mxu0 0.0
    %947 = vmatpush1.msra.mxu0 0.0
    %948 = vmatprep.subr.mxu0 0.0
    %949 = vmatpush1.msra.mxu0 0.0
    %950 = vmatprep.subr.mxu0 0.0
    %951 = vmatpush1.msra.mxu0 0.0
    %952 = vmatprep.subr.mxu0 0.0
    %953 = vmatpush1.msra.mxu0 0.0
    %954 = vmatprep.subr.mxu0 0.0
    %955 = vmatpush1.msra.mxu0 0.0
    %956 = vmatprep.subr.mxu0 0.0
    %957 = vmatpush1.msra.mxu0 0.0
    %958 = vmatprep.subr.mxu0 0.0
    %959 = vmatpush1.msra.mxu0 0.0
    %960 = vmatprep.subr.mxu0 0.0
    %961 = vmatpush1.msra.mxu0 0.0
    %962 = vmatprep.subr.mxu0 0.0
    %963 = vmatpush1.msra.mxu0 0.0
    %964 = vmatprep.subr.mxu0 0.0
    %965 = vmatpush1.msra.mxu0 0.0
    %966 = vmatprep.subr.mxu0 0.0
    %967 = vmatpush1.msra.mxu0 0.0
    %968 = vmatprep.subr.mxu0 0.0
    %969 = vmatpush1.msra.mxu0 0.0
    %970 = vmatprep.subr.mxu0 0.0
    %971 = vmatpush1.msra.mxu0 0.0
    %972 = vmatprep.subr.mxu0 0.0
    %973 = vmatpush1.msra.mxu0 0.0
    %974 = vmatprep.subr.mxu0 0.0
    %975 = vmatpush1.msra.mxu0 0.0
    %976 = vmatprep.subr.mxu0 0.0
    %977 = vmatpush1.msra.mxu0 0.0
    %978 = vmatprep.subr.mxu0 0.0
    %979 = vmatpush1.msra.mxu0 0.0
    %980 = vmatprep.subr.mxu0 0.0
    %981 = vmatpush1.msra.mxu0 0.0
    %982 = vmatprep.subr.mxu0 0.0
    %983 = vmatpush1.msra.mxu0 0.0
    %984 = vmatprep.subr.mxu0 0.0
    %985 = vmatpush1.msra.mxu0 0.0
    %986 = vmatprep.mubr.f32.mxu0 0.0
    %987 = vmatmul.mubr.f32.gmra.mrb[0].mxu0 %v899
    %v988 = vpop.f32.mrb[0].mxu0
    %v989 = vadd.f32 %v896, %v988
    %v990 = vpop.f32.mrb[0].mxu0
    %991 = vmatprep.mubr.f32.mxu0 0.0
    %992 = vmatmul.mubr.f32.gmra.mrb[0].mxu0 %v902
    %v993 = vpop.f32.mrb[0].mxu0
    %v994 = vadd.f32 %v896, %v993
    %v995 = vpop.f32.mrb[0].mxu0
    %996 = vmatprep.mubr.f32.mxu0 0.0
    %997 = vmatmul.mubr.f32.gmra.mrb[0].mxu0 %v905
    %v998 = vpop.f32.mrb[0].mxu0
    %v999 = vadd.f32 %v896, %v998
    %v1000 = vpop.f32.mrb[0].mxu0
    %1001 = vmatprep.mubr.f32.mxu0 0.0
    %1002 = vmatmul.mubr.f32.gmra.mrb[0].mxu0 %v908
    %v1003 = vpop.f32.mrb[0].mxu0
    %v1004 = vadd.f32 %v896, %v1003
    %v1005 = vpop.f32.mrb[0].mxu0
    %1006 = vmatprep.mubr.f32.mxu0 0.0
    %1007 = vmatmul.mubr.f32.gmra.mrb[0].mxu0 %v911
    %v1008 = vpop.f32.mrb[0].mxu0
    %v1009 = vadd.f32 %v896, %v1008
    %v1010 = vpop.f32.mrb[0].mxu0
    %1011 = vmatprep.mubr.f32.mxu0 0.0
    %1012 = vmatmul.mubr.f32.gmra.mrb[0].mxu0 %v914
    %v1013 = vpop.f32.mrb[0].mxu0
    %v1014 = vadd.f32 %v896, %v1013
    %v1015 = vpop.f32.mrb[0].mxu0
    %1016 = vmatprep.mubr.f32.mxu0 0.0
    %1017 = vmatmul.mubr.f32.gmra.mrb[0].mxu0 %v917
    %v1018 = vpop.f32.mrb[0].mxu0
    %v1019 = vadd.f32 %v896, %v1018
    %v1020 = vpop.f32.mrb[0].mxu0
    %1021 = vmatprep.mubr.f32.mxu0 0.0
    %1022 = vmatmul.mubr.f32.gmra.mrb[0].mxu0 %v920
    %v1023 = vpop.f32.mrb[0].mxu0
    %v1024 = vadd.f32 %v896, %v1023
    %v1025 = vpop.f32.mrb[0].mxu0
    %1026 = vdwg.mxu0
    %1027 = vmatprep.subr.mxu0 0.0
    %1028 = vmatpush1.msra.mxu0 %v879
    %1029 = vmatprep.subr.mxu0 0.0
    %1030 = vmatpush1.msra.mxu0 %v880
    %1031 = vmatprep.subr.mxu0 0.0
    %1032 = vmatpush1.msra.mxu0 %v881
    %1033 = vmatprep.subr.mxu0 0.0
    %1034 = vmatpush1.msra.mxu0 %v882
    %1035 = vmatprep.subr.mxu0 0.0
    %1036 = vmatpush1.msra.mxu0 0.0
    %1037 = vmatprep.subr.mxu0 0.0
    %1038 = vmatpush1.msra.mxu0 0.0
    %1039 = vmatprep.subr.mxu0 0.0
    %1040 = vmatpush1.msra.mxu0 0.0
    %1041 = vmatprep.subr.mxu0 0.0
    %1042 = vmatpush1.msra.mxu0 0.0
    %1043 = vmatprep.subr.mxu0 0.0
    %1044 = vmatpush1.msra.mxu0 0.0
    %1045 = vmatprep.subr.mxu0 0.0
    %1046 = vmatpush1.msra.mxu0 0.0
    %1047 = vmatprep.subr.mxu0 0.0
    %1048 = vmatpush1.msra.mxu0 0.0
    %1049 = vmatprep.subr.mxu0 0.0
    %1050 = vmatpush1.msra.mxu0 0.0
    %1051 = vmatprep.subr.mxu0 0.0
    %1052 = vmatpush1.msra.mxu0 0.0
    %1053 = vmatprep.subr.mxu0 0.0
    %1054 = vmatpush1.msra.mxu0 0.0
    %1055 = vmatprep.subr.mxu0 0.0
    %1056 = vmatpush1.msra.mxu0 0.0
    %1057 = vmatprep.subr.mxu0 0.0
    %1058 = vmatpush1.msra.mxu0 0.0
    %1059 = vmatprep.subr.mxu0 0.0
    %1060 = vmatpush1.msra.mxu0 0.0
    %1061 = vmatprep.subr.mxu0 0.0
    %1062 = vmatpush1.msra.mxu0 0.0
    %1063 = vmatprep.subr.mxu0 0.0
    %1064 = vmatpush1.msra.mxu0 0.0
    %1065 = vmatprep.subr.mxu0 0.0
    %1066 = vmatpush1.msra.mxu0 0.0
    %1067 = vmatprep.subr.mxu0 0.0
    %1068 = vmatpush1.msra.mxu0 0.0
    %1069 = vmatprep.subr.mxu0 0.0
    %1070 = vmatpush1.msra.mxu0 0.0
    %1071 = vmatprep.subr.mxu0 0.0
    %1072 = vmatpush1.msra.mxu0 0.0
    %1073 = vmatprep.subr.mxu0 0.0
    %1074 = vmatpush1.msra.mxu0 0.0
    %1075 = vmatprep.subr.mxu0 0.0
    %1076 = vmatpush1.msra.mxu0 0.0
    %1077 = vmatprep.subr.mxu0 0.0
    %1078 = vmatpush1.msra.mxu0 0.0
    %1079 = vmatprep.subr.mxu0 0.0
    %1080 = vmatpush1.msra.mxu0 0.0
    %1081 = vmatprep.subr.mxu0 0.0
    %1082 = vmatpush1.msra.mxu0 0.0
    %1083 = vmatprep.subr.mxu0 0.0
    %1084 = vmatpush1.msra.mxu0 0.0
    %1085 = vmatprep.subr.mxu0 0.0
    %1086 = vmatpush1.msra.mxu0 0.0
    %1087 = vmatprep.subr.mxu0 0.0
    %1088 = vmatpush1.msra.mxu0 0.0
    %1089 = vmatprep.subr.mxu0 0.0
    %1090 = vmatpush1.msra.mxu0 0.0
    %1091 = vmatprep.mubr.f32.mxu0 0.0
    %1092 = vmatmul.mubr.f32.gmra.mrb[0].mxu0 %v268
    %v1093 = vpop.f32.mrb[0].mxu0
    %v1094 = vadd.f32 0.0, %v1093
    %v1095 = vpop.f32.mrb[0].mxu0
    %1096 = vdwg.mxu0
    %v1097 = vadd.f32 %v989, %v1094
    %v1098 = vtanh.pop %v1097
    %v1100 = vsel %vm137, %v1098, 0
    %1102 = vmatprep.subr.mxu0 0.0
    %1103 = vmatpush1.msra.mxu0 %v879
    %1104 = vmatprep.subr.mxu0 0.0
    %1105 = vmatpush1.msra.mxu0 %v880
    %1106 = vmatprep.subr.mxu0 0.0
    %1107 = vmatpush1.msra.mxu0 %v881
    %1108 = vmatprep.subr.mxu0 0.0
    %1109 = vmatpush1.msra.mxu0 %v882
    %1110 = vmatprep.subr.mxu0 0.0
    %1111 = vmatpush1.msra.mxu0 0.0
    %1112 = vmatprep.subr.mxu0 0.0
    %1113 = vmatpush1.msra.mxu0 0.0
    %1114 = vmatprep.subr.mxu0 0.0
    %1115 = vmatpush1.msra.mxu0 0.0
    %1116 = vmatprep.subr.mxu0 0.0
    %1117 = vmatpush1.msra.mxu0 0.0
    %1118 = vmatprep.subr.mxu0 0.0
    %1119 = vmatpush1.msra.mxu0 0.0
    %1120 = vmatprep.subr.mxu0 0.0
    %1121 = vmatpush1.msra.mxu0 0.0
    %1122 = vmatprep.subr.mxu0 0.0
    %1123 = vmatpush1.msra.mxu0 0.0
    %1124 = vmatprep.subr.mxu0 0.0
    %1125 = vmatpush1.msra.mxu0 0.0
    %1126 = vmatprep.subr.mxu0 0.0
    %1127 = vmatpush1.msra.mxu0 0.0
    %1128 = vmatprep.subr.mxu0 0.0
    %1129 = vmatpush1.msra.mxu0 0.0
    %1130 = vmatprep.subr.mxu0 0.0
    %1131 = vmatpush1.msra.mxu0 0.0
    %1132 = vmatprep.subr.mxu0 0.0
    %1133 = vmatpush1.msra.mxu0 0.0
    %1134 = vmatprep.subr.mxu0 0.0
    %1135 = vmatpush1.msra.mxu0 0.0
    %1136 = vmatprep.subr.mxu0 0.0
    %1137 = vmatpush1.msra.mxu0 0.0
    %1138 = vmatprep.subr.mxu0 0.0
    %1139 = vmatpush1.msra.mxu0 0.0
    %1140 = vmatprep.subr.mxu0 0.0
    %1141 = vmatpush1.msra.mxu0 0.0
    %1142 = vmatprep.subr.mxu0 0.0
    %1143 = vmatpush1.msra.mxu0 0.0
    %1144 = vmatprep.subr.mxu0 0.0
    %1145 = vmatpush1.msra.mxu0 0.0
    %1146 = vmatprep.subr.mxu0 0.0
    %1147 = vmatpush1.msra.mxu0 0.0
    %1148 = vmatprep.subr.mxu0 0.0
    %1149 = vmatpush1.msra.mxu0 0.0
    %1150 = vmatprep.subr.mxu0 0.0
    %1151 = vmatpush1.msra.mxu0 0.0
    %1152 = vmatprep.subr.mxu0 0.0
    %1153 = vmatpush1.msra.mxu0 0.0
    %1154 = vmatprep.subr.mxu0 0.0
    %1155 = vmatpush1.msra.mxu0 0.0
    %1156 = vmatprep.subr.mxu0 0.0
    %1157 = vmatpush1.msra.mxu0 0.0
    %1158 = vmatprep.subr.mxu0 0.0
    %1159 = vmatpush1.msra.mxu0 0.0
    %1160 = vmatprep.subr.mxu0 0.0
    %1161 = vmatpush1.msra.mxu0 0.0
    %1162 = vmatprep.subr.mxu0 0.0
    %1163 = vmatpush1.msra.mxu0 0.0
    %1164 = vmatprep.subr.mxu0 0.0
    %1165 = vmatpush1.msra.mxu0 0.0
    %1166 = vmatprep.mubr.f32.mxu0 0.0
    %1167 = vmatmul.mubr.f32.gmra.mrb[0].mxu0 %v1100
    %v1168 = vpop.f32.mrb[0].mxu0
    %v1169 = vadd.f32 0.0, %v1168
    %v1170 = vpop.f32.mrb[0].mxu0
    %1171 = vdwg.mxu0
    %v1172 = vadd.f32 %v994, %v1169
    %v1173 = vtanh.pop %v1172
    %v1175 = vsel %vm137, %v1173, 0
    %1177 = vmatprep.subr.mxu0 0.0
    %1178 = vmatpush1.msra.mxu0 %v879
    %1179 = vmatprep.subr.mxu0 0.0
    %1180 = vmatpush1.msra.mxu0 %v880
    %1181 = vmatprep.subr.mxu0 0.0
    %1182 = vmatpush1.msra.mxu0 %v881
    %1183 = vmatprep.subr.mxu0 0.0
    %1184 = vmatpush1.msra.mxu0 %v882
    %1185 = vmatprep.subr.mxu0 0.0
    %1186 = vmatpush1.msra.mxu0 0.0
    %1187 = vmatprep.subr.mxu0 0.0
    %1188 = vmatpush1.msra.mxu0 0.0
    %1189 = vmatprep.subr.mxu0 0.0
    %1190 = vmatpush1.msra.mxu0 0.0
    %1191 = vmatprep.subr.mxu0 0.0
    %1192 = vmatpush1.msra.mxu0 0.0
    %1193 = vmatprep.subr.mxu0 0.0
    %1194 = vmatpush1.msra.mxu0 0.0
    %1195 = vmatprep.subr.mxu0 0.0
    %1196 = vmatpush1.msra.mxu0 0.0
    %1197 = vmatprep.subr.mxu0 0.0
    %1198 = vmatpush1.msra.mxu0 0.0
    %1199 = vmatprep.subr.mxu0 0.0
    %1200 = vmatpush1.msra.mxu0 0.0
    %1201 = vmatprep.subr.mxu0 0.0
    %1202 = vmatpush1.msra.mxu0 0.0
    %1203 = vmatprep.subr.mxu0 0.0
    %1204 = vmatpush1.msra.mxu0 0.0
    %1205 = vmatprep.subr.mxu0 0.0
    %1206 = vmatpush1.msra.mxu0 0.0
    %1207 = vmatprep.subr.mxu0 0.0
    %1208 = vmatpush1.msra.mxu0 0.0
    %1209 = vmatprep.subr.mxu0 0.0
    %1210 = vmatpush1.msra.mxu0 0.0
    %1211 = vmatprep.subr.mxu0 0.0
    %1212 = vmatpush1.msra.mxu0 0.0
    %1213 = vmatprep.subr.mxu0 0.0
    %1214 = vmatpush1.msra.mxu0 0.0
    %1215 = vmatprep.subr.mxu0 0.0
    %1216 = vmatpush1.msra.mxu0 0.0
    %1217 = vmatprep.subr.mxu0 0.0
    %1218 = vmatpush1.msra.mxu0 0.0
    %1219 = vmatprep.subr.mxu0 0.0
    %1220 = vmatpush1.msra.mxu0 0.0
    %1221 = vmatprep.subr.mxu0 0.0
    %1222 = vmatpush1.msra.mxu0 0.0
    %1223 = vmatprep.subr.mxu0 0.0
    %1224 = vmatpush1.msra.mxu0 0.0
    %1225 = vmatprep.subr.mxu0 0.0
    %1226 = vmatpush1.msra.mxu0 0.0
    %1227 = vmatprep.subr.mxu0 0.0
    %1228 = vmatpush1.msra.mxu0 0.0
    %1229 = vmatprep.subr.mxu0 0.0
    %1230 = vmatpush1.msra.mxu0 0.0
    %1231 = vmatprep.subr.mxu0 0.0
    %1232 = vmatpush1.msra.mxu0 0.0
    %1233 = vmatprep.subr.mxu0 0.0
    %1234 = vmatpush1.msra.mxu0 0.0
    %1235 = vmatprep.subr.mxu0 0.0
    %1236 = vmatpush1.msra.mxu0 0.0
    %1237 = vmatprep.subr.mxu0 0.0
    %1238 = vmatpush1.msra.mxu0 0.0
    %1239 = vmatprep.subr.mxu0 0.0
    %1240 = vmatpush1.msra.mxu0 0.0
    %1241 = vmatprep.mubr.f32.mxu0 0.0
    %1242 = vmatmul.mubr.f32.gmra.mrb[0].mxu0 %v1175
    %v1243 = vpop.f32.mrb[0].mxu0
    %v1244 = vadd.f32 0.0, %v1243
    %v1245 = vpop.f32.mrb[0].mxu0
    %1246 = vdwg.mxu0
    %v1247 = vadd.f32 %v999, %v1244
    %v1248 = vtanh.pop %v1247
    %v1250 = vsel %vm137, %v1248, 0
    %1252 = vmatprep.subr.mxu0 0.0
    %1253 = vmatpush1.msra.mxu0 %v879
    %1254 = vmatprep.subr.mxu0 0.0
    %1255 = vmatpush1.msra.mxu0 %v880
    %1256 = vmatprep.subr.mxu0 0.0
    %1257 = vmatpush1.msra.mxu0 %v881
    %1258 = vmatprep.subr.mxu0 0.0
    %1259 = vmatpush1.msra.mxu0 %v882
    %1260 = vmatprep.subr.mxu0 0.0
    %1261 = vmatpush1.msra.mxu0 0.0
    %1262 = vmatprep.subr.mxu0 0.0
    %1263 = vmatpush1.msra.mxu0 0.0
    %1264 = vmatprep.subr.mxu0 0.0
    %1265 = vmatpush1.msra.mxu0 0.0
    %1266 = vmatprep.subr.mxu0 0.0
    %1267 = vmatpush1.msra.mxu0 0.0
    %1268 = vmatprep.subr.mxu0 0.0
    %1269 = vmatpush1.msra.mxu0 0.0
    %1270 = vmatprep.subr.mxu0 0.0
    %1271 = vmatpush1.msra.mxu0 0.0
    %1272 = vmatprep.subr.mxu0 0.0
    %1273 = vmatpush1.msra.mxu0 0.0
    %1274 = vmatprep.subr.mxu0 0.0
    %1275 = vmatpush1.msra.mxu0 0.0
    %1276 = vmatprep.subr.mxu0 0.0
    %1277 = vmatpush1.msra.mxu0 0.0
    %1278 = vmatprep.subr.mxu0 0.0
    %1279 = vmatpush1.msra.mxu0 0.0
    %1280 = vmatprep.subr.mxu0 0.0
    %1281 = vmatpush1.msra.mxu0 0.0
    %1282 = vmatprep.subr.mxu0 0.0
    %1283 = vmatpush1.msra.mxu0 0.0
    %1284 = vmatprep.subr.mxu0 0.0
    %1285 = vmatpush1.msra.mxu0 0.0
    %1286 = vmatprep.subr.mxu0 0.0
    %1287 = vmatpush1.msra.mxu0 0.0
    %1288 = vmatprep.subr.mxu0 0.0
    %1289 = vmatpush1.msra.mxu0 0.0
    %1290 = vmatprep.subr.mxu0 0.0
    %1291 = vmatpush1.msra.mxu0 0.0
    %1292 = vmatprep.subr.mxu0 0.0
    %1293 = vmatpush1.msra.mxu0 0.0
    %1294 = vmatprep.subr.mxu0 0.0
    %1295 = vmatpush1.msra.mxu0 0.0
    %1296 = vmatprep.subr.mxu0 0.0
    %1297 = vmatpush1.msra.mxu0 0.0
    %1298 = vmatprep.subr.mxu0 0.0
    %1299 = vmatpush1.msra.mxu0 0.0
    %1300 = vmatprep.subr.mxu0 0.0
    %1301 = vmatpush1.msra.mxu0 0.0
    %1302 = vmatprep.subr.mxu0 0.0
    %1303 = vmatpush1.msra.mxu0 0.0
    %1304 = vmatprep.subr.mxu0 0.0
    %1305 = vmatpush1.msra.mxu0 0.0
    %1306 = vmatprep.subr.mxu0 0.0
    %1307 = vmatpush1.msra.mxu0 0.0
    %1308 = vmatprep.subr.mxu0 0.0
    %1309 = vmatpush1.msra.mxu0 0.0
    %1310 = vmatprep.subr.mxu0 0.0
    %1311 = vmatpush1.msra.mxu0 0.0
    %1312 = vmatprep.subr.mxu0 0.0
    %1313 = vmatpush1.msra.mxu0 0.0
    %1314 = vmatprep.subr.mxu0 0.0
    %1315 = vmatpush1.msra.mxu0 0.0
    %1316 = vmatprep.mubr.f32.mxu0 0.0
    %1317 = vmatmul.mubr.f32.gmra.mrb[0].mxu0 %v1250
    %v1318 = vpop.f32.mrb[0].mxu0
    %v1319 = vadd.f32 0.0, %v1318
    %v1320 = vpop.f32.mrb[0].mxu0
    %1321 = vdwg.mxu0
    %v1322 = vadd.f32 %v1004, %v1319
    %v1323 = vtanh.pop %v1322
    %v1325 = vsel %vm137, %v1323, 0
    %1327 = vmatprep.subr.mxu0 0.0
    %1328 = vmatpush1.msra.mxu0 %v879
    %1329 = vmatprep.subr.mxu0 0.0
    %1330 = vmatpush1.msra.mxu0 %v880
    %1331 = vmatprep.subr.mxu0 0.0
    %1332 = vmatpush1.msra.mxu0 %v881
    %1333 = vmatprep.subr.mxu0 0.0
    %1334 = vmatpush1.msra.mxu0 %v882
    %1335 = vmatprep.subr.mxu0 0.0
    %1336 = vmatpush1.msra.mxu0 0.0
    %1337 = vmatprep.subr.mxu0 0.0
    %1338 = vmatpush1.msra.mxu0 0.0
    %1339 = vmatprep.subr.mxu0 0.0
    %1340 = vmatpush1.msra.mxu0 0.0
    %1341 = vmatprep.subr.mxu0 0.0
    %1342 = vmatpush1.msra.mxu0 0.0
    %1343 = vmatprep.subr.mxu0 0.0
    %1344 = vmatpush1.msra.mxu0 0.0
    %1345 = vmatprep.subr.mxu0 0.0
    %1346 = vmatpush1.msra.mxu0 0.0
    %1347 = vmatprep.subr.mxu0 0.0
    %1348 = vmatpush1.msra.mxu0 0.0
    %1349 = vmatprep.subr.mxu0 0.0
    %1350 = vmatpush1.msra.mxu0 0.0
    %1351 = vmatprep.subr.mxu0 0.0
    %1352 = vmatpush1.msra.mxu0 0.0
    %1353 = vmatprep.subr.mxu0 0.0
    %1354 = vmatpush1.msra.mxu0 0.0
    %1355 = vmatprep.subr.mxu0 0.0
    %1356 = vmatpush1.msra.mxu0 0.0
    %1357 = vmatprep.subr.mxu0 0.0
    %1358 = vmatpush1.msra.mxu0 0.0
    %1359 = vmatprep.subr.mxu0 0.0
    %1360 = vmatpush1.msra.mxu0 0.0
    %1361 = vmatprep.subr.mxu0 0.0
    %1362 = vmatpush1.msra.mxu0 0.0
    %1363 = vmatprep.subr.mxu0 0.0
    %1364 = vmatpush1.msra.mxu0 0.0
    %1365 = vmatprep.subr.mxu0 0.0
    %1366 = vmatpush1.msra.mxu0 0.0
    %1367 = vmatprep.subr.mxu0 0.0
    %1368 = vmatpush1.msra.mxu0 0.0
    %1369 = vmatprep.subr.mxu0 0.0
    %1370 = vmatpush1.msra.mxu0 0.0
    %1371 = vmatprep.subr.mxu0 0.0
    %1372 = vmatpush1.msra.mxu0 0.0
    %1373 = vmatprep.subr.mxu0 0.0
    %1374 = vmatpush1.msra.mxu0 0.0
    %1375 = vmatprep.subr.mxu0 0.0
    %1376 = vmatpush1.msra.mxu0 0.0
    %1377 = vmatprep.subr.mxu0 0.0
    %1378 = vmatpush1.msra.mxu0 0.0
    %1379 = vmatprep.subr.mxu0 0.0
    %1380 = vmatpush1.msra.mxu0 0.0
    %1381 = vmatprep.subr.mxu0 0.0
    %1382 = vmatpush1.msra.mxu0 0.0
    %1383 = vmatprep.subr.mxu0 0.0
    %1384 = vmatpush1.msra.mxu0 0.0
    %1385 = vmatprep.subr.mxu0 0.0
    %1386 = vmatpush1.msra.mxu0 0.0
    %1387 = vmatprep.subr.mxu0 0.0
    %1388 = vmatpush1.msra.mxu0 0.0
    %1389 = vmatprep.subr.mxu0 0.0
    %1390 = vmatpush1.msra.mxu0 0.0
    %1391 = vmatprep.mubr.f32.mxu0 0.0
    %1392 = vmatmul.mubr.f32.gmra.mrb[0].mxu0 %v1325
    %v1393 = vpop.f32.mrb[0].mxu0
    %v1394 = vadd.f32 0.0, %v1393
    %v1395 = vpop.f32.mrb[0].mxu0
    %1396 = vdwg.mxu0
    %v1397 = vadd.f32 %v1009, %v1394
    %v1398 = vtanh.pop %v1397
    %v1400 = vsel %vm137, %v1398, 0
    %1402 = vmatprep.subr.mxu0 0.0
    %1403 = vmatpush1.msra.mxu0 %v879
    %1404 = vmatprep.subr.mxu0 0.0
    %1405 = vmatpush1.msra.mxu0 %v880
    %1406 = vmatprep.subr.mxu0 0.0
    %1407 = vmatpush1.msra.mxu0 %v881
    %1408 = vmatprep.subr.mxu0 0.0
    %1409 = vmatpush1.msra.mxu0 %v882
    %1410 = vmatprep.subr.mxu0 0.0
    %1411 = vmatpush1.msra.mxu0 0.0
    %1412 = vmatprep.subr.mxu0 0.0
    %1413 = vmatpush1.msra.mxu0 0.0
    %1414 = vmatprep.subr.mxu0 0.0
    %1415 = vmatpush1.msra.mxu0 0.0
    %1416 = vmatprep.subr.mxu0 0.0
    %1417 = vmatpush1.msra.mxu0 0.0
    %1418 = vmatprep.subr.mxu0 0.0
    %1419 = vmatpush1.msra.mxu0 0.0
    %1420 = vmatprep.subr.mxu0 0.0
    %1421 = vmatpush1.msra.mxu0 0.0
    %1422 = vmatprep.subr.mxu0 0.0
    %1423 = vmatpush1.msra.mxu0 0.0
    %1424 = vmatprep.subr.mxu0 0.0
    %1425 = vmatpush1.msra.mxu0 0.0
    %1426 = vmatprep.subr.mxu0 0.0
    %1427 = vmatpush1.msra.mxu0 0.0
    %1428 = vmatprep.subr.mxu0 0.0
    %1429 = vmatpush1.msra.mxu0 0.0
    %1430 = vmatprep.subr.mxu0 0.0
    %1431 = vmatpush1.msra.mxu0 0.0
    %1432 = vmatprep.subr.mxu0 0.0
    %1433 = vmatpush1.msra.mxu0 0.0
    %1434 = vmatprep.subr.mxu0 0.0
    %1435 = vmatpush1.msra.mxu0 0.0
    %1436 = vmatprep.subr.mxu0 0.0
    %1437 = vmatpush1.msra.mxu0 0.0
    %1438 = vmatprep.subr.mxu0 0.0
    %1439 = vmatpush1.msra.mxu0 0.0
    %1440 = vmatprep.subr.mxu0 0.0
    %1441 = vmatpush1.msra.mxu0 0.0
    %1442 = vmatprep.subr.mxu0 0.0
    %1443 = vmatpush1.msra.mxu0 0.0
    %1444 = vmatprep.subr.mxu0 0.0
    %1445 = vmatpush1.msra.mxu0 0.0
    %1446 = vmatprep.subr.mxu0 0.0
    %1447 = vmatpush1.msra.mxu0 0.0
    %1448 = vmatprep.subr.mxu0 0.0
    %1449 = vmatpush1.msra.mxu0 0.0
    %1450 = vmatprep.subr.mxu0 0.0
    %1451 = vmatpush1.msra.mxu0 0.0
    %1452 = vmatprep.subr.mxu0 0.0
    %1453 = vmatpush1.msra.mxu0 0.0
    %1454 = vmatprep.subr.mxu0 0.0
    %1455 = vmatpush1.msra.mxu0 0.0
    %1456 = vmatprep.subr.mxu0 0.0
    %1457 = vmatpush1.msra.mxu0 0.0
    %1458 = vmatprep.subr.mxu0 0.0
    %1459 = vmatpush1.msra.mxu0 0.0
    %1460 = vmatprep.subr.mxu0 0.0
    %1461 = vmatpush1.msra.mxu0 0.0
    %1462 = vmatprep.subr.mxu0 0.0
    %1463 = vmatpush1.msra.mxu0 0.0
    %1464 = vmatprep.subr.mxu0 0.0
    %1465 = vmatpush1.msra.mxu0 0.0
    %1466 = vmatprep.mubr.f32.mxu0 0.0
    %1467 = vmatmul.mubr.f32.gmra.mrb[0].mxu0 %v1400
    %v1468 = vpop.f32.mrb[0].mxu0
    %v1469 = vadd.f32 0.0, %v1468
    %v1470 = vpop.f32.mrb[0].mxu0
    %1471 = vdwg.mxu0
    %v1472 = vadd.f32 %v1014, %v1469
    %v1473 = vtanh.pop %v1472
    %v1475 = vsel %vm137, %v1473, 0
    %1477 = vmatprep.subr.mxu0 0.0
    %1478 = vmatpush1.msra.mxu0 %v879
    %1479 = vmatprep.subr.mxu0 0.0
    %1480 = vmatpush1.msra.mxu0 %v880
    %1481 = vmatprep.subr.mxu0 0.0
    %1482 = vmatpush1.msra.mxu0 %v881
    %1483 = vmatprep.subr.mxu0 0.0
    %1484 = vmatpush1.msra.mxu0 %v882
    %1485 = vmatprep.subr.mxu0 0.0
    %1486 = vmatpush1.msra.mxu0 0.0
    %1487 = vmatprep.subr.mxu0 0.0
    %1488 = vmatpush1.msra.mxu0 0.0
    %1489 = vmatprep.subr.mxu0 0.0
    %1490 = vmatpush1.msra.mxu0 0.0
    %1491 = vmatprep.subr.mxu0 0.0
    %1492 = vmatpush1.msra.mxu0 0.0
    %1493 = vmatprep.subr.mxu0 0.0
    %1494 = vmatpush1.msra.mxu0 0.0
    %1495 = vmatprep.subr.mxu0 0.0
    %1496 = vmatpush1.msra.mxu0 0.0
    %1497 = vmatprep.subr.mxu0 0.0
    %1498 = vmatpush1.msra.mxu0 0.0
    %1499 = vmatprep.subr.mxu0 0.0
    %1500 = vmatpush1.msra.mxu0 0.0
    %1501 = vmatprep.subr.mxu0 0.0
    %1502 = vmatpush1.msra.mxu0 0.0
    %1503 = vmatprep.subr.mxu0 0.0
    %1504 = vmatpush1.msra.mxu0 0.0
    %1505 = vmatprep.subr.mxu0 0.0
    %1506 = vmatpush1.msra.mxu0 0.0
    %1507 = vmatprep.subr.mxu0 0.0
    %1508 = vmatpush1.msra.mxu0 0.0
    %1509 = vmatprep.subr.mxu0 0.0
    %1510 = vmatpush1.msra.mxu0 0.0
    %1511 = vmatprep.subr.mxu0 0.0
    %1512 = vmatpush1.msra.mxu0 0.0
    %1513 = vmatprep.subr.mxu0 0.0
    %1514 = vmatpush1.msra.mxu0 0.0
    %1515 = vmatprep.subr.mxu0 0.0
    %1516 = vmatpush1.msra.mxu0 0.0
    %1517 = vmatprep.subr.mxu0 0.0
    %1518 = vmatpush1.msra.mxu0 0.0
    %1519 = vmatprep.subr.mxu0 0.0
    %1520 = vmatpush1.msra.mxu0 0.0
    %1521 = vmatprep.subr.mxu0 0.0
    %1522 = vmatpush1.msra.mxu0 0.0
    %1523 = vmatprep.subr.mxu0 0.0
    %1524 = vmatpush1.msra.mxu0 0.0
    %1525 = vmatprep.subr.mxu0 0.0
    %1526 = vmatpush1.msra.mxu0 0.0
    %1527 = vmatprep.subr.mxu0 0.0
    %1528 = vmatpush1.msra.mxu0 0.0
    %1529 = vmatprep.subr.mxu0 0.0
    %1530 = vmatpush1.msra.mxu0 0.0
    %1531 = vmatprep.subr.mxu0 0.0
    %1532 = vmatpush1.msra.mxu0 0.0
    %1533 = vmatprep.subr.mxu0 0.0
    %1534 = vmatpush1.msra.mxu0 0.0
    %1535 = vmatprep.subr.mxu0 0.0
    %1536 = vmatpush1.msra.mxu0 0.0
    %1537 = vmatprep.subr.mxu0 0.0
    %1538 = vmatpush1.msra.mxu0 0.0
    %1539 = vmatprep.subr.mxu0 0.0
    %1540 = vmatpush1.msra.mxu0 0.0
    %1541 = vmatprep.mubr.f32.mxu0 0.0
    %1542 = vmatmul.mubr.f32.gmra.mrb[0].mxu0 %v1475
    %v1543 = vpop.f32.mrb[0].mxu0
    %v1544 = vadd.f32 0.0, %v1543
    %v1545 = vpop.f32.mrb[0].mxu0
    %1546 = vdwg.mxu0
    %v1547 = vadd.f32 %v1019, %v1544
    %v1548 = vtanh.pop %v1547
    %v1550 = vsel %vm137, %v1548, 0
    %1552 = vmatprep.subr.mxu0 0.0
    %1553 = vmatpush1.msra.mxu0 %v879
    %1554 = vmatprep.subr.mxu0 0.0
    %1555 = vmatpush1.msra.mxu0 %v880
    %1556 = vmatprep.subr.mxu0 0.0
    %1557 = vmatpush1.msra.mxu0 %v881
    %1558 = vmatprep.subr.mxu0 0.0
    %1559 = vmatpush1.msra.mxu0 %v882
    %1560 = vmatprep.subr.mxu0 0.0
    %1561 = vmatpush1.msra.mxu0 0.0
    %1562 = vmatprep.subr.mxu0 0.0
    %1563 = vmatpush1.msra.mxu0 0.0
    %1564 = vmatprep.subr.mxu0 0.0
    %1565 = vmatpush1.msra.mxu0 0.0
    %1566 = vmatprep.subr.mxu0 0.0
    %1567 = vmatpush1.msra.mxu0 0.0
    %1568 = vmatprep.subr.mxu0 0.0
    %1569 = vmatpush1.msra.mxu0 0.0
    %1570 = vmatprep.subr.mxu0 0.0
    %1571 = vmatpush1.msra.mxu0 0.0
    %1572 = vmatprep.subr.mxu0 0.0
    %1573 = vmatpush1.msra.mxu0 0.0
    %1574 = vmatprep.subr.mxu0 0.0
    %1575 = vmatpush1.msra.mxu0 0.0
    %1576 = vmatprep.subr.mxu0 0.0
    %1577 = vmatpush1.msra.mxu0 0.0
    %1578 = vmatprep.subr.mxu0 0.0
    %1579 = vmatpush1.msra.mxu0 0.0
    %1580 = vmatprep.subr.mxu0 0.0
    %1581 = vmatpush1.msra.mxu0 0.0
    %1582 = vmatprep.subr.mxu0 0.0
    %1583 = vmatpush1.msra.mxu0 0.0
    %1584 = vmatprep.subr.mxu0 0.0
    %1585 = vmatpush1.msra.mxu0 0.0
    %1586 = vmatprep.subr.mxu0 0.0
    %1587 = vmatpush1.msra.mxu0 0.0
    %1588 = vmatprep.subr.mxu0 0.0
    %1589 = vmatpush1.msra.mxu0 0.0
    %1590 = vmatprep.subr.mxu0 0.0
    %1591 = vmatpush1.msra.mxu0 0.0
    %1592 = vmatprep.subr.mxu0 0.0
    %1593 = vmatpush1.msra.mxu0 0.0
    %1594 = vmatprep.subr.mxu0 0.0
    %1595 = vmatpush1.msra.mxu0 0.0
    %1596 = vmatprep.subr.mxu0 0.0
    %1597 = vmatpush1.msra.mxu0 0.0
    %1598 = vmatprep.subr.mxu0 0.0
    %1599 = vmatpush1.msra.mxu0 0.0
    %1600 = vmatprep.subr.mxu0 0.0
    %1601 = vmatpush1.msra.mxu0 0.0
    %1602 = vmatprep.subr.mxu0 0.0
    %1603 = vmatpush1.msra.mxu0 0.0
    %1604 = vmatprep.subr.mxu0 0.0
    %1605 = vmatpush1.msra.mxu0 0.0
    %1606 = vmatprep.subr.mxu0 0.0
    %1607 = vmatpush1.msra.mxu0 0.0
    %1608 = vmatprep.subr.mxu0 0.0
    %1609 = vmatpush1.msra.mxu0 0.0
    %1610 = vmatprep.subr.mxu0 0.0
    %1611 = vmatpush1.msra.mxu0 0.0
    %1612 = vmatprep.subr.mxu0 0.0
    %1613 = vmatpush1.msra.mxu0 0.0
    %1614 = vmatprep.subr.mxu0 0.0
    %1615 = vmatpush1.msra.mxu0 0.0
    %1616 = vmatprep.mubr.f32.mxu0 0.0
    %1617 = vmatmul.mubr.f32.gmra.mrb[0].mxu0 %v1550
    %v1618 = vpop.f32.mrb[0].mxu0
    %v1619 = vadd.f32 0.0, %v1618
    %v1620 = vpop.f32.mrb[0].mxu0
    %1621 = vdwg.mxu0
    %v1622 = vadd.f32 %v1024, %v1619
    %v1623 = vtanh.pop %v1622
    %v1624 = vld [vmem:[#allocation11] sm:$0xff]
    %v1625 = vld [vmem:[#allocation11 + $0x8] sm:$0xff]
    %v1626 = vld [vmem:[#allocation11 + $0x10] sm:$0xff]
    %v1627 = vld [vmem:[#allocation11 + $0x18] sm:$0xff]
    %v1628 = vld [vmem:[%s8] sm:$0x1]
    %v1630 = vlaneseq
    %v1631 = vshrl.u32 %v1630, 7
    %v1632 = vsub.s32 0, %v1631
    %v1633 = vrot.slane %v1628, %v1632
    %v1636 = vsel %vm137, %v1623, 0
    %1638 = vmatprep.subr.mxu0 0.0
    %1639 = vmatpush1.msra.mxu0 %v1624
    %1640 = vmatprep.subr.mxu0 0.0
    %1641 = vmatpush1.msra.mxu0 %v1625
    %1642 = vmatprep.subr.mxu0 0.0
    %1643 = vmatpush1.msra.mxu0 %v1626
    %1644 = vmatprep.subr.mxu0 0.0
    %1645 = vmatpush1.msra.mxu0 %v1627
    %1646 = vmatprep.subr.mxu0 0.0
    %1647 = vmatpush1.msra.mxu0 0.0
    %1648 = vmatprep.subr.mxu0 0.0
    %1649 = vmatpush1.msra.mxu0 0.0
    %1650 = vmatprep.subr.mxu0 0.0
    %1651 = vmatpush1.msra.mxu0 0.0
    %1652 = vmatprep.subr.mxu0 0.0
    %1653 = vmatpush1.msra.mxu0 0.0
    %1654 = vmatprep.subr.mxu0 0.0
    %1655 = vmatpush1.msra.mxu0 0.0
    %1656 = vmatprep.subr.mxu0 0.0
    %1657 = vmatpush1.msra.mxu0 0.0
    %1658 = vmatprep.subr.mxu0 0.0
    %1659 = vmatpush1.msra.mxu0 0.0
    %1660 = vmatprep.subr.mxu0 0.0
    %1661 = vmatpush1.msra.mxu0 0.0
    %1662 = vmatprep.subr.mxu0 0.0
    %1663 = vmatpush1.msra.mxu0 0.0
    %1664 = vmatprep.subr.mxu0 0.0
    %1665 = vmatpush1.msra.mxu0 0.0
    %1666 = vmatprep.subr.mxu0 0.0
    %1667 = vmatpush1.msra.mxu0 0.0
    %1668 = vmatprep.subr.mxu0 0.0
    %1669 = vmatpush1.msra.mxu0 0.0
    %1670 = vmatprep.subr.mxu0 0.0
    %1671 = vmatpush1.msra.mxu0 0.0
    %1672 = vmatprep.subr.mxu0 0.0
    %1673 = vmatpush1.msra.mxu0 0.0
    %1674 = vmatprep.subr.mxu0 0.0
    %1675 = vmatpush1.msra.mxu0 0.0
    %1676 = vmatprep.subr.mxu0 0.0
    %1677 = vmatpush1.msra.mxu0 0.0
    %1678 = vmatprep.subr.mxu0 0.0
    %1679 = vmatpush1.msra.mxu0 0.0
    %1680 = vmatprep.subr.mxu0 0.0
    %1681 = vmatpush1.msra.mxu0 0.0
    %1682 = vmatprep.subr.mxu0 0.0
    %1683 = vmatpush1.msra.mxu0 0.0
    %1684 = vmatprep.subr.mxu0 0.0
    %1685 = vmatpush1.msra.mxu0 0.0
    %1686 = vmatprep.subr.mxu0 0.0
    %1687 = vmatpush1.msra.mxu0 0.0
    %1688 = vmatprep.subr.mxu0 0.0
    %1689 = vmatpush1.msra.mxu0 0.0
    %1690 = vmatprep.subr.mxu0 0.0
    %1691 = vmatpush1.msra.mxu0 0.0
    %1692 = vmatprep.subr.mxu0 0.0
    %1693 = vmatpush1.msra.mxu0 0.0
    %1694 = vmatprep.subr.mxu0 0.0
    %1695 = vmatpush1.msra.mxu0 0.0
    %1696 = vmatprep.subr.mxu0 0.0
    %1697 = vmatpush1.msra.mxu0 0.0
    %1698 = vmatprep.subr.mxu0 0.0
    %1699 = vmatpush1.msra.mxu0 0.0
    %1700 = vmatprep.subr.mxu0 0.0
    %1701 = vmatpush1.msra.mxu0 0.0
    %1702 = vmatprep.mubr.f32.mxu0 0.0
    %1703 = vmatmul.mubr.f32.gmra.mrb[0].mxu0 %v1636
    %v1704 = vpop.f32.mrb[0].mxu0
    %v1705 = vadd.f32 %v1633, %v1704
    %v1706 = vpop.f32.mrb[0].mxu0
    %1707 = vdwg.mxu0
    %1708 = vst [vmem:[%s9] sm:$0xff] %v1705
    // Predicated region
    $region62: #{my_rnn_forward.1} parent=1 // pred_check
      _
    $region63: #{my_rnn_forward.1} parent=1 // pred_check_branch
      %1710 = sbr.rel (0) target = $region65
    $region64: #{my_rnn_forward.1} parent=1 // pred_region
      _
    $region65: #{my_rnn_forward.1} parent=1 // pred_fallthru
      _
    // Predicated region
    $region66: #{my_rnn_forward.1} parent=1 // pred_check
      _
    $region67: #{my_rnn_forward.1} parent=1 // pred_check_branch
      %1712 = sbr.rel (0) target = $region69
    $region68: #{my_rnn_forward.1} parent=1 // pred_region
      _
    $region69: #{my_rnn_forward.1} parent=1 // pred_fallthru
      _
    %1713 = vsyncpa [#allocation4], 1
    %1714 = vsyncpa [#allocation6], 1
    %1715 = vsyncpa [#allocation9], 1
    %1716 = vsyncpa [#allocation12], 1

</llo_original>
